<compile_context>
chip_gen: v7x
topology: tpu7x:2x2x1
jax: 0.10.0
libtpu: 0.0.40
codegen_flags: <defaults>
</compile_context>

<pallas_src>
import functools
import math

import jax
import jax.numpy as jnp
import numpy as np
from jax import lax
from jax.experimental import pallas as pl
from jax.experimental.pallas import tpu as pltpu


# ----------------------------- Pallas kernel ---------------------------------
def emsa_kernel(xq_ref, sel_ref, rmat_ref, qkv_ref, packc_ref, mix_ref, aux_ref, out_ref,
                *, nq, nk, kk, h, d_k, d_v):
    c = xq_ref.shape[-1]
    hdk = h * d_k
    hdv = h * d_v
    hnk = h * nk
    nsr = kk * nk                                       # im2col rows = taps * output positions

    x = xq_ref[0]                                       # (nq, c) queries of this batch element

    # ---- packed parameter views (static slices) ----
    w_q = qkv_ref[0:c, 0:hdk]                           # (c, h*dk)
    w_kv = qkv_ref[0:c, hdk:hdk + hdk + hdv]            # (c, h*dk + h*dv)
    b_q = qkv_ref[c:c + 1, 0:hdk]                       # (1, h*dk)
    b_kv = qkv_ref[c:c + 1, hdk:hdk + hdk + hdv]        # (1, h*dk + h*dv)

    w_tap = packc_ref[0:nsr, :]                         # (nsr, c) depthwise weight per im2col row
    b_dw = packc_ref[nsr:nsr + 1, :]
    ln_g = packc_ref[nsr + 1:nsr + 2, :]
    ln_b = packc_ref[nsr + 2:nsr + 3, :]
    b_o = packc_ref[nsr + 3:nsr + 4, :]
    w_o = packc_ref[nsr + 4:nsr + 4 + hdv, :]           # (h*dv, c)

    m_mix = mix_ref[0:hnk, :]                           # (h*nk, h*nk) = kron(w_t^T, I_nk)/sqrt(dk)
    b_t = mix_ref[hnk:hnk + 1, :]                       # (1, h*nk)
    headsum = mix_ref[hnk + 1:2 * hnk + 1, :]           # (h*nk, h*nk) block-diag ones

    rep = aux_ref[:, 0:nk]                              # (h*nk, nk) head-replication matrix
    mask_k = aux_ref[:, nk:nk + hdk]                    # (h*nk, h*dk) block mask
    mask_v = aux_ref[:, nk + hdk:nk + hdk + hdv]        # (h*nk, h*dv) block mask

    # ---- depthwise strided sr_conv as im2col: gather -> per-row weight -> tap-reduce ----
    gath = jnp.dot(sel_ref[...], x, preferred_element_type=jnp.float32)         # (nsr, c)
    x_sr = jnp.dot(rmat_ref[...], gath * w_tap,
                   preferred_element_type=jnp.float32) + b_dw                   # (nk, c)

    # ---- LayerNorm over channels (one-pass stats) ----
    inv_c = 1.0 / c
    mu = jnp.sum(x_sr, axis=-1, keepdims=True) * inv_c
    ex2 = jnp.sum(x_sr * x_sr, axis=-1, keepdims=True) * inv_c
    x_sr = (x_sr - mu) * lax.rsqrt(ex2 - mu * mu + 1e-5) * ln_g + ln_b

    # ---- projections; block-diagonal K / V via replication matmul + static mask ----
    qf = jnp.dot(x, w_q, preferred_element_type=jnp.float32) + b_q              # (nq, h*dk)
    x_rep = jnp.dot(rep, x_sr, preferred_element_type=jnp.float32)              # (h*nk, c)
    kv_rep = jnp.dot(x_rep, w_kv, preferred_element_type=jnp.float32) + b_kv    # (h*nk, h*dk+h*dv)
    kbd = kv_rep[:, 0:hdk] * mask_k                                             # (h*nk, h*dk)
    vbd = kv_rep[:, hdk:hdk + hdv] * mask_v                                     # (h*nk, h*dv)

    # ---- all-head scores; 1/sqrt(dk) and the 1x1 head-mix conv are folded into m_mix ----
    scores = lax.dot_general(qf, kbd, (((1,), (1,)), ((), ())),
                             preferred_element_type=jnp.float32)                # (nq, h*nk)
    mixed = jnp.dot(scores, m_mix, preferred_element_type=jnp.float32) + b_t    # (nq, h*nk)

    # ---- slab-wide per-head softmax (one row-max; per-row constant cancels per head) ----
    row_max = jnp.max(mixed, axis=-1, keepdims=True)
    e = jnp.exp(mixed - row_max)
    denom = jnp.dot(e, headsum, preferred_element_type=jnp.float32)             # per-head sums
    p = e / denom                                                               # exact reciprocal

    # ---- per-head InstanceNorm over the (nq, nk) plane; stats via MXU matmuls, one-pass var ----
    inv_plane = 1.0 / (nq * nk)
    ones_row = jnp.ones((1, nq), jnp.float32)
    s1 = jnp.dot(jnp.dot(ones_row, p, preferred_element_type=jnp.float32),
                 headsum, preferred_element_type=jnp.float32)                   # (1, h*nk)
    s2 = jnp.dot(jnp.dot(ones_row, p * p, preferred_element_type=jnp.float32),
                 headsum, preferred_element_type=jnp.float32)                   # (1, h*nk)
    mu_p = s1 * inv_plane
    var_p = s2 * inv_plane - mu_p * mu_p
    att = (p - mu_p) * lax.rsqrt(var_p + 1e-5)                                  # (nq, h*nk)

    # ---- all-head context + output projection, stored directly ----
    ctx = jnp.dot(att, vbd, preferred_element_type=jnp.float32)                 # (nq, h*dv)
    out = jnp.dot(ctx, w_o, preferred_element_type=jnp.float32) + b_o           # (nq, c)
    out_ref[0] = out.astype(out_ref.dtype)


# ----------------------------- wrapper ---------------------------------------
def emsa_pallas(queries, params, *, H, W, ratio, h, d_k, d_v):
    # NOTE: with ratio > 1 the PyTorch forward only uses `queries`; keys/values are ignored.
    b_s, nq, c = queries.shape
    assert nq == H * W
    K = ratio + 1
    stride = ratio
    pad = ratio // 2
    h_out = (H + 2 * pad - K) // stride + 1
    w_out = (W + 2 * pad - K) // stride + 1
    nk = h_out * w_out
    kk = K * K
    nsr = kk * nk
    hdk, hdv, hnk = h * d_k, h * d_v, h * nk

    # ---- host-side static 0/1 matrices for the im2col depthwise conv (per batch element) ----
    sel = np.zeros((nsr, nq), np.float32)       # sel[t*nk+p, s] = 1 iff input s feeds output p, tap t
    for kh in range(K):
        for kw in range(K):
            t = kh * K + kw
            for oh in range(h_out):
                for ow in range(w_out):
                    ih = oh * stride + kh - pad
                    iw = ow * stride + kw - pad
                    if 0 <= ih < H and 0 <= iw < W:
                        sel[t * nk + oh * w_out + ow, ih * W + iw] = 1.0
    rmat = np.zeros((nk, nsr), np.float32)      # tap reduction: rmat[p, t*nk+p] = 1
    for t in range(kk):
        for p in range(nk):
            rmat[p, t * nk + p] = 1.0
    sel_j = jnp.asarray(sel)
    rmat_j = jnp.asarray(rmat)

    # ---- packed channel-width parameters ----
    w_tap = jnp.repeat(params["w_dw"].reshape(kk, c), nk, axis=0)               # (nsr, c)
    pack_c = jnp.concatenate([
        w_tap,
        params["b_dw"][None, :], params["ln_g"][None, :],
        params["ln_b"][None, :], params["b_o"][None, :],
        params["w_o"],
    ], axis=0)                                                                  # (nsr+4+h*dv, c)

    pack_qkv = jnp.concatenate([
        jnp.concatenate([params["w_q"], params["w_k"], params["w_v"]], axis=1),
        jnp.concatenate([params["b_q"], params["b_k"], params["b_v"]])[None, :],
    ], axis=0)                                                                  # (c+1, 2*h*dk+h*dv)

    scale = 1.0 / math.sqrt(d_k)
    eye_nk = np.eye(nk, dtype=np.float32)
    headsum = np.kron(np.eye(h, dtype=np.float32), np.ones((nk, nk), np.float32))
    pack_mix = jnp.concatenate([
        scale * jnp.kron(params["w_t"].T, jnp.asarray(eye_nk)),                 # (h*nk, h*nk)
        jnp.repeat(params["b_t"], nk)[None, :],                                 # (1, h*nk)
        jnp.asarray(headsum),                                                   # (h*nk, h*nk)
    ], axis=0)                                                                  # (2*h*nk+1, h*nk)

    # replication + head masks for block-diagonal K / V assembly
    rep = np.kron(np.ones((h, 1), np.float32), eye_nk)                          # (h*nk, nk)
    row_head = np.arange(hnk)[:, None] // nk
    mask_k = (row_head == (np.arange(hdk)[None, :] // d_k)).astype(np.float32)  # (h*nk, h*dk)
    mask_v = (row_head == (np.arange(hdv)[None, :] // d_v)).astype(np.float32)  # (h*nk, h*dv)
    pack_aux = jnp.asarray(np.concatenate([rep, mask_k, mask_v], axis=1))       # (h*nk, nk+h*dk+h*dv)

    kernel = functools.partial(emsa_kernel, nq=nq, nk=nk, kk=kk, h=h, d_k=d_k, d_v=d_v)

    def shared(a):
        nd = a.ndim
        return pl.BlockSpec(a.shape, lambda b, _nd=nd: (0,) * _nd)

    out = pl.pallas_call(
        kernel,
        out_shape=jax.ShapeDtypeStruct((b_s, nq, c), queries.dtype),
        grid_spec=pltpu.PrefetchScalarGridSpec(
            num_scalar_prefetch=0,
            grid=(b_s,),                                   # one batch element per grid step
            in_specs=[pl.BlockSpec((1, nq, c), lambda b: (b, 0, 0)),
                      shared(sel_j), shared(rmat_j),
                      shared(pack_qkv), shared(pack_c), shared(pack_mix), shared(pack_aux)],
            out_specs=pl.BlockSpec((1, nq, c), lambda b: (b, 0, 0)),
        ),
        compiler_params=pltpu.CompilerParams(dimension_semantics=("parallel",)),
    )(queries, sel_j, rmat_j, pack_qkv, pack_c, pack_mix, pack_aux)
    return out


# ----------------------------- pure-JAX reference -----------------------------
def emsa_ref(queries, params, *, H, W, ratio, h, d_k, d_v):
    P = jax.lax.Precision.HIGHEST
    b_s, nq, c = queries.shape
    pad = ratio // 2

    q = jnp.matmul(queries, params["w_q"], precision=P) + params["b_q"]
    q = q.reshape(b_s, nq, h, d_k).transpose(0, 2, 1, 3)               # (b,h,nq,dk)

    x = queries.transpose(0, 2, 1).reshape(b_s, c, H, W)               # NCHW
    w_oihw = jnp.transpose(params["w_dw"], (2, 0, 1))[:, None, :, :]   # (c,1,K,K)
    x = lax.conv_general_dilated(x, w_oihw, window_strides=(ratio, ratio),
                                 padding=((pad, pad), (pad, pad)),
                                 dimension_numbers=("NCHW", "OIHW", "NCHW"),
                                 feature_group_count=c, precision=P)
    x = x + params["b_dw"][None, :, None, None]
    x = x.reshape(b_s, c, -1).transpose(0, 2, 1)                       # (b, nk, c)
    mu = x.mean(-1, keepdims=True)
    var = ((x - mu) ** 2).mean(-1, keepdims=True)
    x = (x - mu) / jnp.sqrt(var + 1e-5) * params["ln_g"] + params["ln_b"]

    k = (jnp.matmul(x, params["w_k"], precision=P) + params["b_k"]
         ).reshape(b_s, -1, h, d_k).transpose(0, 2, 3, 1)              # (b,h,dk,nk)
    v = (jnp.matmul(x, params["w_v"], precision=P) + params["b_v"]
         ).reshape(b_s, -1, h, d_v).transpose(0, 2, 1, 3)              # (b,h,nk,dv)

    att = jnp.matmul(q, k, precision=P) / math.sqrt(d_k)               # (b,h,nq,nk)
    att = jnp.einsum("oi,biqk->boqk", params["w_t"], att,
                     precision=P) + params["b_t"][None, :, None, None]
    att = jax.nn.softmax(att, axis=-1)
    mu = att.mean(axis=(2, 3), keepdims=True)
    var = ((att - mu) ** 2).mean(axis=(2, 3), keepdims=True)
    att = (att - mu) / jnp.sqrt(var + 1e-5)

    out = jnp.matmul(att, v, precision=P).transpose(0, 2, 1, 3).reshape(b_s, nq, h * d_v)
    return jnp.matmul(out, params["w_o"], precision=P) + params["b_o"]


# ----------------------------- main -------------------------------------------
if __name__ == "__main__":
    b_s, d_model, d_k, d_v, h = 2, 16, 8, 8, 4
    H = W = 7
    ratio = 3
    nq = H * W
    K = ratio + 1

    key = jax.random.PRNGKey(0)
    ks = jax.random.split(key, 16)

    # deterministic synthetic parameters (shapes follow EMSA.__init__)
    params = {
        "w_q": 0.1 * jax.random.normal(ks[0], (d_model, h * d_k), jnp.float32),
        "b_q": 0.1 * jax.random.normal(ks[1], (h * d_k,), jnp.float32),
        "w_k": 0.1 * jax.random.normal(ks[2], (d_model, h * d_k), jnp.float32),
        "b_k": 0.1 * jax.random.normal(ks[3], (h * d_k,), jnp.float32),
        "w_v": 0.1 * jax.random.normal(ks[4], (d_model, h * d_v), jnp.float32),
        "b_v": 0.1 * jax.random.normal(ks[5], (h * d_v,), jnp.float32),
        "w_o": 0.1 * jax.random.normal(ks[6], (h * d_v, d_model), jnp.float32),
        "b_o": 0.1 * jax.random.normal(ks[7], (d_model,), jnp.float32),
        "w_dw": 0.2 * jax.random.normal(ks[8], (K, K, d_model), jnp.float32),   # depthwise sr_conv
        "b_dw": 0.1 * jax.random.normal(ks[9], (d_model,), jnp.float32),
        "ln_g": 1.0 + 0.1 * jax.random.normal(ks[10], (d_model,), jnp.float32),
        "ln_b": 0.1 * jax.random.normal(ks[11], (d_model,), jnp.float32),
        "w_t": 0.3 * jax.random.normal(ks[12], (h, h), jnp.float32),            # transform 1x1 conv
        "b_t": 0.1 * jax.random.normal(ks[13], (h,), jnp.float32),
    }

    queries = jax.random.normal(ks[14], (b_s, nq, d_model), jnp.float32)
    keys = jax.random.normal(ks[15], (b_s, nq, d_model), jnp.float32)   # unused when ratio > 1
    values = keys                                                       # unused when ratio > 1

    out = emsa_pallas(queries, params, H=H, W=W, ratio=ratio, h=h, d_k=d_k, d_v=d_v)
    out = jax.block_until_ready(out)

    ref = emsa_ref(queries, params, H=H, W=W, ratio=ratio, h=h, d_k=d_k, d_v=d_v)
    np.testing.assert_allclose(np.asarray(out), np.asarray(ref), rtol=2e-2, atol=2e-3)

    print("KERNEL_OK")
</pallas_src>

<mosaic_0001>
module attributes {stable_mosaic.version = 11 : i64} {
  func.func @emsa_kernel(%arg0: i32, %arg1: memref<1x49x16xf32, #tpu.memory_space<vmem>>, %arg2: memref<64x49xf32, #tpu.memory_space<vmem>>, %arg3: memref<4x64xf32, #tpu.memory_space<vmem>>, %arg4: memref<17x96xf32, #tpu.memory_space<vmem>>, %arg5: memref<100x16xf32, #tpu.memory_space<vmem>>, %arg6: memref<33x16xf32, #tpu.memory_space<vmem>>, %arg7: memref<16x68xf32, #tpu.memory_space<vmem>>, %arg8: memref<1x49x16xf32, #tpu.memory_space<vmem>>) attributes {dimension_semantics = [#tpu.dimension_semantics<parallel>], iteration_bounds = array<i64: 2>, scalar_prefetch = 0 : i64, scratch_operands = 0 : i64, tpu.core_type = #tpu.core_type<tc>, window_params = [{transform_indices = @transform_0, window_bounds = array<i64: 1, 49, 16>}, {pipeline_mode = #tpu.pipeline_mode<synchronous>, transform_indices = @transform_1, window_bounds = array<i64: 64, 49>}, {pipeline_mode = #tpu.pipeline_mode<synchronous>, transform_indices = @transform_2, window_bounds = array<i64: 4, 64>}, {pipeline_mode = #tpu.pipeline_mode<synchronous>, transform_indices = @transform_3, window_bounds = array<i64: 17, 96>}, {pipeline_mode = #tpu.pipeline_mode<synchronous>, transform_indices = @transform_4, window_bounds = array<i64: 100, 16>}, {pipeline_mode = #tpu.pipeline_mode<synchronous>, transform_indices = @transform_5, window_bounds = array<i64: 33, 16>}, {pipeline_mode = #tpu.pipeline_mode<synchronous>, transform_indices = @transform_6, window_bounds = array<i64: 16, 68>}, {transform_indices = @transform_7, window_bounds = array<i64: 1, 49, 16>}]} {
    %c0 = arith.constant 0 : index
    %c0_0 = arith.constant 0 : index
    %c0_1 = arith.constant 0 : index
    %0 = vector.load %arg1[%c0, %c0_0, %c0_1] : memref<1x49x16xf32, #tpu.memory_space<vmem>>, vector<1x49x16xf32>
    %1 = vector.shape_cast %0 : vector<1x49x16xf32> to vector<49x16xf32>
    %c0_2 = arith.constant 0 : index
    %c0_3 = arith.constant 0 : index
    %2 = vector.load %arg4[%c0_2, %c0_3] : memref<17x96xf32, #tpu.memory_space<vmem>>, vector<16x32xf32>
    %c0_4 = arith.constant 0 : index
    %c32 = arith.constant 32 : index
    %3 = vector.load %arg4[%c0_4, %c32] : memref<17x96xf32, #tpu.memory_space<vmem>>, vector<16x64xf32>
    %c16 = arith.constant 16 : index
    %c0_5 = arith.constant 0 : index
    %4 = vector.load %arg4[%c16, %c0_5] : memref<17x96xf32, #tpu.memory_space<vmem>>, vector<1x32xf32>
    %c16_6 = arith.constant 16 : index
    %c32_7 = arith.constant 32 : index
    %5 = vector.load %arg4[%c16_6, %c32_7] : memref<17x96xf32, #tpu.memory_space<vmem>>, vector<1x64xf32>
    %c0_8 = arith.constant 0 : index
    %c0_9 = arith.constant 0 : index
    %6 = vector.load %arg5[%c0_8, %c0_9] : memref<100x16xf32, #tpu.memory_space<vmem>>, vector<64x16xf32>
    %c64 = arith.constant 64 : index
    %c0_10 = arith.constant 0 : index
    %7 = vector.load %arg5[%c64, %c0_10] : memref<100x16xf32, #tpu.memory_space<vmem>>, vector<1x16xf32>
    %c65 = arith.constant 65 : index
    %c0_11 = arith.constant 0 : index
    %8 = vector.load %arg5[%c65, %c0_11] : memref<100x16xf32, #tpu.memory_space<vmem>>, vector<1x16xf32>
    %c66 = arith.constant 66 : index
    %c0_12 = arith.constant 0 : index
    %9 = vector.load %arg5[%c66, %c0_12] : memref<100x16xf32, #tpu.memory_space<vmem>>, vector<1x16xf32>
    %c67 = arith.constant 67 : index
    %c0_13 = arith.constant 0 : index
    %10 = vector.load %arg5[%c67, %c0_13] : memref<100x16xf32, #tpu.memory_space<vmem>>, vector<1x16xf32>
    %c68 = arith.constant 68 : index
    %c0_14 = arith.constant 0 : index
    %11 = vector.load %arg5[%c68, %c0_14] : memref<100x16xf32, #tpu.memory_space<vmem>>, vector<32x16xf32>
    %c0_15 = arith.constant 0 : index
    %c0_16 = arith.constant 0 : index
    %12 = vector.load %arg6[%c0_15, %c0_16] : memref<33x16xf32, #tpu.memory_space<vmem>>, vector<16x16xf32>
    %c16_17 = arith.constant 16 : index
    %c0_18 = arith.constant 0 : index
    %13 = vector.load %arg6[%c16_17, %c0_18] : memref<33x16xf32, #tpu.memory_space<vmem>>, vector<1x16xf32>
    %c17 = arith.constant 17 : index
    %c0_19 = arith.constant 0 : index
    %14 = vector.load %arg6[%c17, %c0_19] : memref<33x16xf32, #tpu.memory_space<vmem>>, vector<16x16xf32>
    %c0_20 = arith.constant 0 : index
    %c0_21 = arith.constant 0 : index
    %15 = vector.load %arg7[%c0_20, %c0_21] : memref<16x68xf32, #tpu.memory_space<vmem>>, vector<16x4xf32>
    %c0_22 = arith.constant 0 : index
    %c4 = arith.constant 4 : index
    %16 = vector.load %arg7[%c0_22, %c4] : memref<16x68xf32, #tpu.memory_space<vmem>>, vector<16x32xf32>
    %c0_23 = arith.constant 0 : index
    %c36 = arith.constant 36 : index
    %17 = vector.load %arg7[%c0_23, %c36] : memref<16x68xf32, #tpu.memory_space<vmem>>, vector<16x32xf32>
    %c0_24 = arith.constant 0 : index
    %c0_25 = arith.constant 0 : index
    %18 = vector.load %arg2[%c0_24, %c0_25] : memref<64x49xf32, #tpu.memory_space<vmem>>, vector<64x49xf32>
    %cst = arith.constant dense<0.000000e+00> : vector<64x16xf32>
    %19 = tpu.matmul %18, %1, %cst {dimension_numbers = #tpu.dot_dimension_numbers<[1], [0], [0], [1], [0, 0, 1, 1], [], []>} : vector<64x49xf32>, vector<49x16xf32>, vector<64x16xf32> -> vector<64x16xf32>
    %c0_26 = arith.constant 0 : index
    %c0_27 = arith.constant 0 : index
    %20 = vector.load %arg3[%c0_26, %c0_27] : memref<4x64xf32, #tpu.memory_space<vmem>>, vector<4x64xf32>
    %21 = arith.mulf %19, %6 : vector<64x16xf32>
    %cst_28 = arith.constant dense<0.000000e+00> : vector<4x16xf32>
    %22 = tpu.matmul %20, %21, %cst_28 {dimension_numbers = #tpu.dot_dimension_numbers<[1], [0], [0], [1], [0, 0, 1, 1], [], []>} : vector<4x64xf32>, vector<64x16xf32>, vector<4x16xf32> -> vector<4x16xf32>
    %23 = vector.broadcast %7 : vector<1x16xf32> to vector<4x16xf32>
    %24 = arith.addf %22, %23 : vector<4x16xf32>
    %cst_29 = arith.constant dense<0.000000e+00> : vector<4xf32>
    %25 = vector.multi_reduction <add>, %24, %cst_29 [1] : vector<4x16xf32> to vector<4xf32>
    %26 = vector.shape_cast %25 : vector<4xf32> to vector<4x1xf32>
    %cst_30 = arith.constant 6.250000e-02 : f32
    %27 = vector.broadcast %cst_30 : f32 to vector<4x1xf32>
    %28 = arith.mulf %26, %27 : vector<4x1xf32>
    %29 = arith.mulf %24, %24 : vector<4x16xf32>
    %cst_31 = arith.constant dense<0.000000e+00> : vector<4xf32>
    %30 = vector.multi_reduction <add>, %29, %cst_31 [1] : vector<4x16xf32> to vector<4xf32>
    %31 = vector.shape_cast %30 : vector<4xf32> to vector<4x1xf32>
    %cst_32 = arith.constant 6.250000e-02 : f32
    %32 = vector.broadcast %cst_32 : f32 to vector<4x1xf32>
    %33 = arith.mulf %31, %32 : vector<4x1xf32>
    %34 = vector.broadcast %28 : vector<4x1xf32> to vector<4x16xf32>
    %35 = arith.subf %24, %34 : vector<4x16xf32>
    %36 = arith.mulf %28, %28 : vector<4x1xf32>
    %37 = arith.subf %33, %36 : vector<4x1xf32>
    %cst_33 = arith.constant 9.99999974E-6 : f32
    %38 = vector.broadcast %cst_33 : f32 to vector<4x1xf32>
    %39 = arith.addf %37, %38 : vector<4x1xf32>
    %40 = math.rsqrt %39 : vector<4x1xf32>
    %41 = vector.broadcast %40 : vector<4x1xf32> to vector<4x16xf32>
    %42 = arith.mulf %35, %41 : vector<4x16xf32>
    %43 = vector.broadcast %8 : vector<1x16xf32> to vector<4x16xf32>
    %44 = arith.mulf %42, %43 : vector<4x16xf32>
    %45 = vector.broadcast %9 : vector<1x16xf32> to vector<4x16xf32>
    %46 = arith.addf %44, %45 : vector<4x16xf32>
    %cst_34 = arith.constant dense<0.000000e+00> : vector<49x32xf32>
    %47 = tpu.matmul %1, %2, %cst_34 {dimension_numbers = #tpu.dot_dimension_numbers<[1], [0], [0], [1], [0, 0, 1, 1], [], []>} : vector<49x16xf32>, vector<16x32xf32>, vector<49x32xf32> -> vector<49x32xf32>
    %48 = vector.broadcast %4 : vector<1x32xf32> to vector<49x32xf32>
    %49 = arith.addf %47, %48 : vector<49x32xf32>
    %cst_35 = arith.constant dense<0.000000e+00> : vector<16x16xf32>
    %50 = tpu.matmul %15, %46, %cst_35 {dimension_numbers = #tpu.dot_dimension_numbers<[1], [0], [0], [1], [0, 0, 1, 1], [], []>} : vector<16x4xf32>, vector<4x16xf32>, vector<16x16xf32> -> vector<16x16xf32>
    %cst_36 = arith.constant dense<0.000000e+00> : vector<16x64xf32>
    %51 = tpu.matmul %50, %3, %cst_36 {dimension_numbers = #tpu.dot_dimension_numbers<[1], [0], [0], [1], [0, 0, 1, 1], [], []>} : vector<16x16xf32>, vector<16x64xf32>, vector<16x64xf32> -> vector<16x64xf32>
    %52 = vector.broadcast %5 : vector<1x64xf32> to vector<16x64xf32>
    %53 = arith.addf %51, %52 : vector<16x64xf32>
    %54 = vector.extract_strided_slice %53 {offsets = [0, 0], sizes = [16, 32], strides = [1, 1]} : vector<16x64xf32> to vector<16x32xf32>
    %55 = arith.mulf %54, %16 : vector<16x32xf32>
    %56 = vector.extract_strided_slice %53 {offsets = [0, 32], sizes = [16, 32], strides = [1, 1]} : vector<16x64xf32> to vector<16x32xf32>
    %57 = arith.mulf %56, %17 : vector<16x32xf32>
    %cst_37 = arith.constant dense<0.000000e+00> : vector<49x16xf32>
    %58 = tpu.matmul %49, %55, %cst_37 {dimension_numbers = #tpu.dot_dimension_numbers<[1], [1], [0], [0], [0, 0, 1, 0], [], []>} : vector<49x32xf32>, vector<16x32xf32>, vector<49x16xf32> -> vector<49x16xf32>
    %cst_38 = arith.constant dense<0.000000e+00> : vector<49x16xf32>
    %59 = tpu.matmul %58, %12, %cst_38 {dimension_numbers = #tpu.dot_dimension_numbers<[1], [0], [0], [1], [0, 0, 1, 1], [], []>} : vector<49x16xf32>, vector<16x16xf32>, vector<49x16xf32> -> vector<49x16xf32>
    %60 = vector.broadcast %13 : vector<1x16xf32> to vector<49x16xf32>
    %61 = arith.addf %59, %60 : vector<49x16xf32>
    %cst_39 = arith.constant dense<0xFF800000> : vector<49xf32>
    %62 = vector.multi_reduction <maximumf>, %61, %cst_39 [1] : vector<49x16xf32> to vector<49xf32>
    %63 = vector.shape_cast %62 : vector<49xf32> to vector<49x1xf32>
    %64 = vector.broadcast %63 : vector<49x1xf32> to vector<49x16xf32>
    %65 = arith.subf %61, %64 : vector<49x16xf32>
    %66 = math.exp %65 : vector<49x16xf32>
    %cst_40 = arith.constant dense<0.000000e+00> : vector<49x16xf32>
    %67 = tpu.matmul %66, %14, %cst_40 {dimension_numbers = #tpu.dot_dimension_numbers<[1], [0], [0], [1], [0, 0, 1, 1], [], []>} : vector<49x16xf32>, vector<16x16xf32>, vector<49x16xf32> -> vector<49x16xf32>
    %68 = arith.divf %66, %67 : vector<49x16xf32>
    %cst_41 = arith.constant 1.000000e+00 : f32
    %69 = vector.broadcast %cst_41 : f32 to vector<1x49xf32>
    %cst_42 = arith.constant dense<0.000000e+00> : vector<1x16xf32>
    %70 = tpu.matmul %69, %68, %cst_42 {dimension_numbers = #tpu.dot_dimension_numbers<[1], [0], [0], [1], [0, 0, 1, 1], [], []>} : vector<1x49xf32>, vector<49x16xf32>, vector<1x16xf32> -> vector<1x16xf32>
    %cst_43 = arith.constant dense<0.000000e+00> : vector<1x16xf32>
    %71 = tpu.matmul %70, %14, %cst_43 {dimension_numbers = #tpu.dot_dimension_numbers<[1], [0], [0], [1], [0, 0, 1, 1], [], []>} : vector<1x16xf32>, vector<16x16xf32>, vector<1x16xf32> -> vector<1x16xf32>
    %72 = arith.mulf %68, %68 : vector<49x16xf32>
    %cst_44 = arith.constant dense<0.000000e+00> : vector<1x16xf32>
    %73 = tpu.matmul %69, %72, %cst_44 {dimension_numbers = #tpu.dot_dimension_numbers<[1], [0], [0], [1], [0, 0, 1, 1], [], []>} : vector<1x49xf32>, vector<49x16xf32>, vector<1x16xf32> -> vector<1x16xf32>
    %cst_45 = arith.constant dense<0.000000e+00> : vector<1x16xf32>
    %74 = tpu.matmul %73, %14, %cst_45 {dimension_numbers = #tpu.dot_dimension_numbers<[1], [0], [0], [1], [0, 0, 1, 1], [], []>} : vector<1x16xf32>, vector<16x16xf32>, vector<1x16xf32> -> vector<1x16xf32>
    %cst_46 = arith.constant 0.00510204071 : f32
    %75 = vector.broadcast %cst_46 : f32 to vector<1x16xf32>
    %76 = arith.mulf %71, %75 : vector<1x16xf32>
    %cst_47 = arith.constant 0.00510204071 : f32
    %77 = vector.broadcast %cst_47 : f32 to vector<1x16xf32>
    %78 = arith.mulf %74, %77 : vector<1x16xf32>
    %79 = arith.mulf %76, %76 : vector<1x16xf32>
    %80 = arith.subf %78, %79 : vector<1x16xf32>
    %81 = vector.broadcast %76 : vector<1x16xf32> to vector<49x16xf32>
    %82 = arith.subf %68, %81 : vector<49x16xf32>
    %cst_48 = arith.constant 9.99999974E-6 : f32
    %83 = vector.broadcast %cst_48 : f32 to vector<1x16xf32>
    %84 = arith.addf %80, %83 : vector<1x16xf32>
    %85 = math.rsqrt %84 : vector<1x16xf32>
    %86 = vector.broadcast %85 : vector<1x16xf32> to vector<49x16xf32>
    %87 = arith.mulf %82, %86 : vector<49x16xf32>
    %cst_49 = arith.constant dense<0.000000e+00> : vector<49x32xf32>
    %88 = tpu.matmul %87, %57, %cst_49 {dimension_numbers = #tpu.dot_dimension_numbers<[1], [0], [0], [1], [0, 0, 1, 1], [], []>} : vector<49x16xf32>, vector<16x32xf32>, vector<49x32xf32> -> vector<49x32xf32>
    %cst_50 = arith.constant dense<0.000000e+00> : vector<49x16xf32>
    %89 = tpu.matmul %88, %11, %cst_50 {dimension_numbers = #tpu.dot_dimension_numbers<[1], [0], [0], [1], [0, 0, 1, 1], [], []>} : vector<49x32xf32>, vector<32x16xf32>, vector<49x16xf32> -> vector<49x16xf32>
    %90 = vector.broadcast %10 : vector<1x16xf32> to vector<49x16xf32>
    %91 = arith.addf %89, %90 : vector<49x16xf32>
    %c0_51 = arith.constant 0 : index
    %c0_52 = arith.constant 0 : index
    %c0_53 = arith.constant 0 : index
    %92 = vector.load %arg8[%c0_51, %c0_52, %c0_53] : memref<1x49x16xf32, #tpu.memory_space<vmem>>, vector<1x49x16xf32>
    %93 = vector.shape_cast %92 : vector<1x49x16xf32> to vector<49x16xf32>
    %94 = vector.shape_cast %91 : vector<49x16xf32> to vector<1x49x16xf32>
    tpu.vector_store %arg8[%c0_51, %c0_52, %c0_53], %94 {strides = array<i32>} : memref<1x49x16xf32, #tpu.memory_space<vmem>>, vector<1x49x16xf32>,
    return
  }
  func.func @transform_0(%arg0: i32) -> (i32, i32, i32) {
    %c0_i32 = arith.constant 0 : i32
    %c0_i32_0 = arith.constant 0 : i32
    %c0_i32_1 = arith.constant 0 : i32
    return %arg0, %c0_i32, %c0_i32_0 : i32, i32, i32
  }
  func.func @transform_1(%arg0: i32) -> (i32, i32) {
    %c0_i32 = arith.constant 0 : i32
    %c0_i32_0 = arith.constant 0 : i32
    %c0_i32_1 = arith.constant 0 : i32
    return %c0_i32, %c0_i32_0 : i32, i32
  }
  func.func @transform_2(%arg0: i32) -> (i32, i32) {
    %c0_i32 = arith.constant 0 : i32
    %c0_i32_0 = arith.constant 0 : i32
    %c0_i32_1 = arith.constant 0 : i32
    return %c0_i32, %c0_i32_0 : i32, i32
  }
  func.func @transform_3(%arg0: i32) -> (i32, i32) {
    %c0_i32 = arith.constant 0 : i32
    %c0_i32_0 = arith.constant 0 : i32
    %c0_i32_1 = arith.constant 0 : i32
    return %c0_i32, %c0_i32_0 : i32, i32
  }
  func.func @transform_4(%arg0: i32) -> (i32, i32) {
    %c0_i32 = arith.constant 0 : i32
    %c0_i32_0 = arith.constant 0 : i32
    %c0_i32_1 = arith.constant 0 : i32
    return %c0_i32, %c0_i32_0 : i32, i32
  }
  func.func @transform_5(%arg0: i32) -> (i32, i32) {
    %c0_i32 = arith.constant 0 : i32
    %c0_i32_0 = arith.constant 0 : i32
    %c0_i32_1 = arith.constant 0 : i32
    return %c0_i32, %c0_i32_0 : i32, i32
  }
  func.func @transform_6(%arg0: i32) -> (i32, i32) {
    %c0_i32 = arith.constant 0 : i32
    %c0_i32_0 = arith.constant 0 : i32
    %c0_i32_1 = arith.constant 0 : i32
    return %c0_i32, %c0_i32_0 : i32, i32
  }
  func.func @transform_7(%arg0: i32) -> (i32, i32, i32) {
    %c0_i32 = arith.constant 0 : i32
    %c0_i32_0 = arith.constant 0 : i32
    %c0_i32_1 = arith.constant 0 : i32
    return %arg0, %c0_i32, %c0_i32_0 : i32, i32, i32
  }
}

</mosaic_0001>

<llo_original>
// kernel: tpu_custom_call.1
$region0: #{tpu_custom_call.1}
  #allocation0 [shape = 'u32[]', space=smem, size = 0x4, offset = 0x4, fixed_abs, tag = 'smem constant byte address 0x4 - core index']
  #allocation1 [shape = 'u32[144,128]{1,0:T(1,128)}', space=vmem, size = 0x12000, scoped, tag = 'internal scratch']
  %s0 = inlined_call_operand.vmem [shape: f32[2,49,16], index: 0, kind: input, shape index: {}]
  %s1 = inlined_call_operand.vmem [shape: f32[64,49], index: 1, kind: input, shape index: {}]
  %s2 = inlined_call_operand.vmem [shape: f32[4,64], index: 2, kind: input, shape index: {}]
  %s3 = inlined_call_operand.vmem [shape: f32[17,96], index: 3, kind: input, shape index: {}]
  %s4 = inlined_call_operand.vmem [shape: f32[100,16], index: 4, kind: input, shape index: {}]
  %s5 = inlined_call_operand.vmem [shape: f32[33,16], index: 5, kind: input, shape index: {}]
  %s6 = inlined_call_operand.vmem [shape: f32[16,68], index: 6, kind: input, shape index: {}]
  %s7 = inlined_call_operand.vmem [shape: f32[2,49,16], index: 7, kind: output, shape index: {}]
  %s8 = sld [smem:[#allocation0]]
  $region61: #{tpu_custom_call.1} parent=0
    _
  %s10 = ssub.s32 1, %s8
  %s11 = scalar_select 0, %s10, %s8
  loop: start=0, step=1, limit=4
  $region2: #{tpu_custom_call.1} parent=0 // loop_pre_header
    _
  $region3: #{tpu_custom_call.1} parent=0 // loop_header
    %s13 = sphi 0, %s17
    %p14 = scmp.ge.s32.totalorder %s13, 4
    %s23 = sphi 0, %s25
    %s26 = sphi 0, %s23
    %s27 = sphi 0, %s26
    %s43 = sphi 0, %s27
    %s47 = sphi 0, %s47
    %s49 = sphi 0, %s47
    %s50 = sphi 0, %s49
    %s64 = sphi 0, %s50
    %s68 = sphi 0, %s68
    %s70 = sphi 0, %s68
    %s71 = sphi 0, %s70
    %s85 = sphi 0, %s71
    %s89 = sphi 0, %s89
    %s91 = sphi 0, %s89
    %s92 = sphi 0, %s91
    %s106 = sphi 0, %s92
    %s110 = sphi 0, %s110
    %s112 = sphi 0, %s110
    %s113 = sphi 0, %s112
    %s127 = sphi 0, %s113
    %s131 = sphi 0, %s131
    %s133 = sphi 0, %s131
    %s134 = sphi 0, %s133
    %s148 = sphi 0, %s134
    %s152 = sphi 0, %s152
    %s154 = sphi 0, %s152
    %s155 = sphi 0, %s154
    %s169 = sphi 0, %s155
    %s175 = sphi 0, %s177
    %s178 = sphi 0, %s175
    %s179 = sphi 0, %s178
    %s195 = sphi 0, %s179
  $region4: #{tpu_custom_call.1} parent=0 // loop_header_branch
    %16 = sbr.rel (%p14) target = $region8
  $region5: #{tpu_custom_call.1} parent=0 // loop_body
    %s18 = ssub.s32 %s13, 1
    %s19 = ssub.s32 %s13, 2
    %s20 = sadd.s32 %s13, 1
    %s21 = ssub.s32 %s13, %s20
    %p22 = scmp.eq.s32.totalorder %s21, 0
    %s24 = sadd.s32 %s23, 1
    %s25 = scalar_select %p22, %s23, %s24
    %p28 = pneg %p22
    %p29 = scmp.eq.s32.totalorder %s13, 1
    %p30 = por %p28, %p29
    %p31 = scmp.ne.s32.totalorder %s23, %s26
    %p32 = scmp.eq.s32.totalorder %s13, 0
    %p33 = por %p31, %p32
    %p34 = scmp.ne.s32.totalorder %s23, %s26
    %p35 = scmp.eq.s32.totalorder %s18, 1
    %p36 = por %p34, %p35
    %p37 = scmp.ne.s32.totalorder %s26, %s27
    %p38 = scmp.eq.s32.totalorder %s18, 0
    %p39 = por %p37, %p38
    %p40 = scmp.ne.s32.totalorder %s26, %s27
    %p41 = scmp.eq.s32.totalorder %s19, 1
    %p42 = por %p40, %p41
    %p44 = scmp.ne.s32.totalorder %s27, %s43
    %p45 = scmp.eq.s32.totalorder %s19, 0
    %p46 = por %p44, %p45
    %s48 = sadd.s32 %s47, 1
    %p51 = scmp.eq.s32.totalorder %s13, 1
    %p52 = scmp.ne.s32.totalorder %s47, %s49
    %p53 = scmp.eq.s32.totalorder %s13, 0
    %p54 = por %p52, %p53
    %p55 = scmp.ne.s32.totalorder %s47, %s49
    %p56 = scmp.eq.s32.totalorder %s18, 1
    %p57 = por %p55, %p56
    %p58 = scmp.ne.s32.totalorder %s49, %s50
    %p59 = scmp.eq.s32.totalorder %s18, 0
    %p60 = por %p58, %p59
    %p61 = scmp.ne.s32.totalorder %s49, %s50
    %p62 = scmp.eq.s32.totalorder %s19, 1
    %p63 = por %p61, %p62
    %p65 = scmp.ne.s32.totalorder %s50, %s64
    %p66 = scmp.eq.s32.totalorder %s19, 0
    %p67 = por %p65, %p66
    %s69 = sadd.s32 %s68, 1
    %p72 = scmp.eq.s32.totalorder %s13, 1
    %p73 = scmp.ne.s32.totalorder %s68, %s70
    %p74 = scmp.eq.s32.totalorder %s13, 0
    %p75 = por %p73, %p74
    %p76 = scmp.ne.s32.totalorder %s68, %s70
    %p77 = scmp.eq.s32.totalorder %s18, 1
    %p78 = por %p76, %p77
    %p79 = scmp.ne.s32.totalorder %s70, %s71
    %p80 = scmp.eq.s32.totalorder %s18, 0
    %p81 = por %p79, %p80
    %p82 = scmp.ne.s32.totalorder %s70, %s71
    %p83 = scmp.eq.s32.totalorder %s19, 1
    %p84 = por %p82, %p83
    %p86 = scmp.ne.s32.totalorder %s71, %s85
    %p87 = scmp.eq.s32.totalorder %s19, 0
    %p88 = por %p86, %p87
    %s90 = sadd.s32 %s89, 1
    %p93 = scmp.eq.s32.totalorder %s13, 1
    %p94 = scmp.ne.s32.totalorder %s89, %s91
    %p95 = scmp.eq.s32.totalorder %s13, 0
    %p96 = por %p94, %p95
    %p97 = scmp.ne.s32.totalorder %s89, %s91
    %p98 = scmp.eq.s32.totalorder %s18, 1
    %p99 = por %p97, %p98
    %p100 = scmp.ne.s32.totalorder %s91, %s92
    %p101 = scmp.eq.s32.totalorder %s18, 0
    %p102 = por %p100, %p101
    %p103 = scmp.ne.s32.totalorder %s91, %s92
    %p104 = scmp.eq.s32.totalorder %s19, 1
    %p105 = por %p103, %p104
    %p107 = scmp.ne.s32.totalorder %s92, %s106
    %p108 = scmp.eq.s32.totalorder %s19, 0
    %p109 = por %p107, %p108
    %s111 = sadd.s32 %s110, 1
    %p114 = scmp.eq.s32.totalorder %s13, 1
    %p115 = scmp.ne.s32.totalorder %s110, %s112
    %p116 = scmp.eq.s32.totalorder %s13, 0
    %p117 = por %p115, %p116
    %p118 = scmp.ne.s32.totalorder %s110, %s112
    %p119 = scmp.eq.s32.totalorder %s18, 1
    %p120 = por %p118, %p119
    %p121 = scmp.ne.s32.totalorder %s112, %s113
    %p122 = scmp.eq.s32.totalorder %s18, 0
    %p123 = por %p121, %p122
    %p124 = scmp.ne.s32.totalorder %s112, %s113
    %p125 = scmp.eq.s32.totalorder %s19, 1
    %p126 = por %p124, %p125
    %p128 = scmp.ne.s32.totalorder %s113, %s127
    %p129 = scmp.eq.s32.totalorder %s19, 0
    %p130 = por %p128, %p129
    %s132 = sadd.s32 %s131, 1
    %p135 = scmp.eq.s32.totalorder %s13, 1
    %p136 = scmp.ne.s32.totalorder %s131, %s133
    %p137 = scmp.eq.s32.totalorder %s13, 0
    %p138 = por %p136, %p137
    %p139 = scmp.ne.s32.totalorder %s131, %s133
    %p140 = scmp.eq.s32.totalorder %s18, 1
    %p141 = por %p139, %p140
    %p142 = scmp.ne.s32.totalorder %s133, %s134
    %p143 = scmp.eq.s32.totalorder %s18, 0
    %p144 = por %p142, %p143
    %p145 = scmp.ne.s32.totalorder %s133, %s134
    %p146 = scmp.eq.s32.totalorder %s19, 1
    %p147 = por %p145, %p146
    %p149 = scmp.ne.s32.totalorder %s134, %s148
    %p150 = scmp.eq.s32.totalorder %s19, 0
    %p151 = por %p149, %p150
    %s153 = sadd.s32 %s152, 1
    %p156 = scmp.eq.s32.totalorder %s13, 1
    %p157 = scmp.ne.s32.totalorder %s152, %s154
    %p158 = scmp.eq.s32.totalorder %s13, 0
    %p159 = por %p157, %p158
    %p160 = scmp.ne.s32.totalorder %s152, %s154
    %p161 = scmp.eq.s32.totalorder %s18, 1
    %p162 = por %p160, %p161
    %p163 = scmp.ne.s32.totalorder %s154, %s155
    %p164 = scmp.eq.s32.totalorder %s18, 0
    %p165 = por %p163, %p164
    %p166 = scmp.ne.s32.totalorder %s154, %s155
    %p167 = scmp.eq.s32.totalorder %s19, 1
    %p168 = por %p166, %p167
    %p170 = scmp.ne.s32.totalorder %s155, %s169
    %p171 = scmp.eq.s32.totalorder %s19, 0
    %p172 = por %p170, %p171
    %s173 = ssub.s32 %s13, %s20
    %p174 = scmp.eq.s32.totalorder %s173, 0
    %s176 = sadd.s32 %s175, 1
    %s177 = scalar_select %p174, %s175, %s176
    %p180 = pneg %p174
    %p181 = scmp.eq.s32.totalorder %s13, 1
    %p182 = por %p180, %p181
    %p183 = scmp.ne.s32.totalorder %s175, %s178
    %p184 = scmp.eq.s32.totalorder %s13, 0
    %p185 = por %p183, %p184
    %p186 = scmp.ne.s32.totalorder %s175, %s178
    %p187 = scmp.eq.s32.totalorder %s18, 1
    %p188 = por %p186, %p187
    %p189 = scmp.ne.s32.totalorder %s178, %s179
    %p190 = scmp.eq.s32.totalorder %s18, 0
    %p191 = por %p189, %p190
    %p192 = scmp.ne.s32.totalorder %s178, %s179
    %p193 = scmp.eq.s32.totalorder %s19, 1
    %p194 = por %p192, %p193
    %p196 = scmp.ne.s32.totalorder %s179, %s195
    %p197 = scmp.eq.s32.totalorder %s19, 0
    %p198 = por %p196, %p197
    %p199 = scmp.le.s32.totalorder 1, %s13
    %p200 = scmp.lt.s32.totalorder %s13, 3
    %p201 = pnand %p199, %p200
    %p202 = pneg %p201
    // Predicated region
    $region9: #{tpu_custom_call.1} parent=5 // pred_check
      _
    $region10: #{tpu_custom_call.1} parent=5 // pred_check_branch
      %204 = sbr.rel (%p201) target = $region12
    $region11: #{tpu_custom_call.1} parent=5 // pred_region
      %s205 = ssub.s32 %s13, 1
      // Predicated region
      $region13: #{tpu_custom_call.1} parent=11 // pred_check
        %p206 = pneg %p60
      $region14: #{tpu_custom_call.1} parent=11 // pred_check_branch
        %208 = sbr.rel (%p206) target = $region16
      $region15: #{tpu_custom_call.1} parent=11 // pred_region
        _
      $region16: #{tpu_custom_call.1} parent=11 // pred_fallthru
        _
      // Predicated region
      $region17: #{tpu_custom_call.1} parent=11 // pred_check
        %p209 = pneg %p81
      $region18: #{tpu_custom_call.1} parent=11 // pred_check_branch
        %211 = sbr.rel (%p209) target = $region20
      $region19: #{tpu_custom_call.1} parent=11 // pred_region
        _
      $region20: #{tpu_custom_call.1} parent=11 // pred_fallthru
        _
      // Predicated region
      $region21: #{tpu_custom_call.1} parent=11 // pred_check
        %p212 = pneg %p102
      $region22: #{tpu_custom_call.1} parent=11 // pred_check_branch
        %214 = sbr.rel (%p212) target = $region24
      $region23: #{tpu_custom_call.1} parent=11 // pred_region
        _
      $region24: #{tpu_custom_call.1} parent=11 // pred_fallthru
        _
      // Predicated region
      $region25: #{tpu_custom_call.1} parent=11 // pred_check
        %p215 = pneg %p123
      $region26: #{tpu_custom_call.1} parent=11 // pred_check_branch
        %217 = sbr.rel (%p215) target = $region28
      $region27: #{tpu_custom_call.1} parent=11 // pred_region
        _
      $region28: #{tpu_custom_call.1} parent=11 // pred_fallthru
        _
      // Predicated region
      $region29: #{tpu_custom_call.1} parent=11 // pred_check
        %p218 = pneg %p144
      $region30: #{tpu_custom_call.1} parent=11 // pred_check_branch
        %220 = sbr.rel (%p218) target = $region32
      $region31: #{tpu_custom_call.1} parent=11 // pred_region
        _
      $region32: #{tpu_custom_call.1} parent=11 // pred_fallthru
        _
      // Predicated region
      $region33: #{tpu_custom_call.1} parent=11 // pred_check
        %p221 = pneg %p165
      $region34: #{tpu_custom_call.1} parent=11 // pred_check_branch
        %223 = sbr.rel (%p221) target = $region36
      $region35: #{tpu_custom_call.1} parent=11 // pred_region
        _
      $region36: #{tpu_custom_call.1} parent=11 // pred_fallthru
        _
    $region12: #{tpu_custom_call.1} parent=5 // pred_fallthru
      _
    %p224 = scmp.lt.s32.totalorder %s13, 2
    // Predicated region
    $region37: #{tpu_custom_call.1} parent=5 // pred_check
      %p225 = pneg %p224
    $region38: #{tpu_custom_call.1} parent=5 // pred_check_branch
      %227 = sbr.rel (%p225) target = $region40
    $region39: #{tpu_custom_call.1} parent=5 // pred_region
      // Predicated region
      $region41: #{tpu_custom_call.1} parent=39 // pred_check
        %p228 = pneg %p33
      $region42: #{tpu_custom_call.1} parent=39 // pred_check_branch
        %230 = sbr.rel (%p228) target = $region44
      $region43: #{tpu_custom_call.1} parent=39 // pred_region
        %p231 = scmp.lt.s32.totalorder %s13, 1
        %s232 = scalar_select %p231, %s13, 1
        %s233 = smul.addr %s232, 7
        %s234 = smul.addr %s233, 8
        %s235 = scalar_lea.vmem %s0, %s234
      $region44: #{tpu_custom_call.1} parent=39 // pred_fallthru
        _
    $region40: #{tpu_custom_call.1} parent=5 // pred_fallthru
      _
    %p236 = scmp.le.s32.totalorder 1, %s13
    %p237 = scmp.lt.s32.totalorder %s13, 3
    %p238 = pnand %p236, %p237
    %p239 = pneg %p238
    // Predicated region
    $region45: #{tpu_custom_call.1} parent=5 // pred_check
      _
    $region46: #{tpu_custom_call.1} parent=5 // pred_check_branch
      %241 = sbr.rel (%p238) target = $region48
    $region47: #{tpu_custom_call.1} parent=5 // pred_region
      %s242 = ssub.s32 %s13, 1
      %p243 = scmp.lt.s32.totalorder %s18, 1
      %s244 = scalar_select %p243, %s18, 1
      %s245 = smul.addr %s244, 7
      %s246 = smul.addr %s245, 8
      %s247 = scalar_lea.vmem %s0, %s246
      %p248 = pneg %p39
      %p249 = pneg %p36
      %p250 = pneg %p60
      %p251 = pneg %p57
      %p252 = pneg %p81
      %p253 = pneg %p78
      %p254 = pneg %p102
      %p255 = pneg %p99
      %p256 = pneg %p123
      %p257 = pneg %p120
      %p258 = pneg %p144
      %p259 = pneg %p141
      %p260 = pneg %p165
      %p261 = pneg %p162
      %p262 = pneg %p191
      %p263 = pneg %p188
      %p264 = scmp.lt.s32.totalorder %s18, 1
      %s265 = scalar_select %p264, %s18, 1
      %s266 = smul.addr %s265, 7
      %s267 = smul.addr %s266, 8
      %s268 = scalar_lea.vmem %s7, %s267
      %p269 = scmp.lt.s32.totalorder %s18, 1
      %s270 = scalar_select %p269, %s18, 1
      %s271 = smul.addr %s270, 7
      %s272 = smul.addr %s271, 8
      %s273 = scalar_lea.vmem %s0, %s272
      %p274 = scmp.lt.s32.totalorder %s18, 1
      %s275 = scalar_select %p274, %s18, 1
      %s276 = smul.addr %s275, 7
      %s277 = smul.addr %s276, 8
      %s278 = scalar_lea.vmem %s7, %s277
      %v279 = vld [vmem:[%s273] sm:$0xff]
      %v280 = vld [vmem:[%s273 + $0x8] sm:$0xff]
      %v281 = vld [vmem:[%s273 + $0x10] sm:$0xff]
      %v282 = vld [vmem:[%s273 + $0x18] sm:$0xff]
      %v283 = vld [vmem:[%s273 + $0x20] sm:$0xff]
      %v284 = vld [vmem:[%s273 + $0x28] sm:$0xff]
      %v285 = vld [vmem:[%s273 + $0x30] sm:$0x1]
      %v286 = vld [vmem:[%s3] sm:$0xff]
      %v287 = vld [vmem:[%s3 + $0x8] sm:$0xff]
      %v288 = vld [vmem:[%s3 + $0x10] sm:$0x1]
      %v289 = vld [vmem:[%s4] sm:$0xff]
      %v290 = vld [vmem:[%s4 + $0x8] sm:$0xff]
      %v291 = vld [vmem:[%s4 + $0x10] sm:$0xff]
      %v292 = vld [vmem:[%s4 + $0x18] sm:$0xff]
      %v293 = vld [vmem:[%s4 + $0x20] sm:$0xff]
      %v294 = vld [vmem:[%s4 + $0x28] sm:$0xff]
      %v295 = vld [vmem:[%s4 + $0x30] sm:$0xff]
      %v296 = vld [vmem:[%s4 + $0x38] sm:$0xff]
      %v297 = vld [vmem:[%s4 + $0x40] sm:$0x1]
      %v298 = vld [vmem:[%s4 + $0x41] sm:$0x1]
      %v299 = vld [vmem:[%s4 + $0x42] sm:$0x1]
      %v300 = vld [vmem:[%s4 + $0x43] sm:$0x1]
      %v301 = vld [vmem:[%s4 + $0x44] sm:$0xff]
      %v302 = vld [vmem:[%s4 + $0x4c] sm:$0xff]
      %v303 = vld [vmem:[%s4 + $0x54] sm:$0xff]
      %v304 = vld [vmem:[%s4 + $0x5c] sm:$0xff]
      %v305 = vld [vmem:[%s5] sm:$0xff]
      %v306 = vld [vmem:[%s5 + $0x8] sm:$0xff]
      %v307 = vld [vmem:[%s5 + $0x10] sm:$0x1]
      %v308 = vld [vmem:[%s5 + $0x11] sm:$0xff]
      %v309 = vld [vmem:[%s5 + $0x19] sm:$0xff]
      %v310 = vld [vmem:[%s6] sm:$0xff]
      %v311 = vld [vmem:[%s6 + $0x8] sm:$0xff]
      %v312 = vld [vmem:[%s1] sm:$0xff]
      %v313 = vld [vmem:[%s1 + $0x8] sm:$0xff]
      %v314 = vld [vmem:[%s1 + $0x10] sm:$0xff]
      %v315 = vld [vmem:[%s1 + $0x18] sm:$0xff]
      %v316 = vld [vmem:[%s1 + $0x20] sm:$0xff]
      %v317 = vld [vmem:[%s1 + $0x28] sm:$0xff]
      %v318 = vld [vmem:[%s1 + $0x30] sm:$0xff]
      %v319 = vld [vmem:[%s1 + $0x38] sm:$0xff]
      %vm320 = vcmask 400384
      %v322 = vsel %vm320, %v312, 0
      %v325 = vsel %vm320, %v313, 0
      %v328 = vsel %vm320, %v314, 0
      %v331 = vsel %vm320, %v315, 0
      %v334 = vsel %vm320, %v316, 0
      %v337 = vsel %vm320, %v317, 0
      %v340 = vsel %vm320, %v318, 0
      %v343 = vsel %vm320, %v319, 0
      %vm345 = vcmask 1040384
      %v347 = vsel %vm345, %v285, 0
      %349 = vmatprep.subr.mxu0 0.0
      %350 = vmatpush1.msra.mxu0 %v279
      %351 = vmatprep.subr.mxu0 0.0
      %352 = vmatpush1.msra.mxu0 %v280
      %353 = vmatprep.subr.mxu0 0.0
      %354 = vmatpush1.msra.mxu0 %v281
      %355 = vmatprep.subr.mxu0 0.0
      %356 = vmatpush1.msra.mxu0 %v282
      %357 = vmatprep.subr.mxu0 0.0
      %358 = vmatpush1.msra.mxu0 %v283
      %359 = vmatprep.subr.mxu0 0.0
      %360 = vmatpush1.msra.mxu0 %v284
      %361 = vmatprep.subr.mxu0 0.0
      %362 = vmatpush1.msra.mxu0 %v347
      %363 = vmatprep.subr.mxu0 0.0
      %364 = vmatpush1.msra.mxu0 0.0
      %365 = vmatprep.subr.mxu0 0.0
      %366 = vmatpush1.msra.mxu0 0.0
      %367 = vmatprep.subr.mxu0 0.0
      %368 = vmatpush1.msra.mxu0 0.0
      %369 = vmatprep.subr.mxu0 0.0
      %370 = vmatpush1.msra.mxu0 0.0
      %371 = vmatprep.subr.mxu0 0.0
      %372 = vmatpush1.msra.mxu0 0.0
      %373 = vmatprep.subr.mxu0 0.0
      %374 = vmatpush1.msra.mxu0 0.0
      %375 = vmatprep.subr.mxu0 0.0
      %376 = vmatpush1.msra.mxu0 0.0
      %377 = vmatprep.subr.mxu0 0.0
      %378 = vmatpush1.msra.mxu0 0.0
      %379 = vmatprep.subr.mxu0 0.0
      %380 = vmatpush1.msra.mxu0 0.0
      %381 = vmatprep.subr.mxu0 0.0
      %382 = vmatpush1.msra.mxu0 0.0
      %383 = vmatprep.subr.mxu0 0.0
      %384 = vmatpush1.msra.mxu0 0.0
      %385 = vmatprep.subr.mxu0 0.0
      %386 = vmatpush1.msra.mxu0 0.0
      %387 = vmatprep.subr.mxu0 0.0
      %388 = vmatpush1.msra.mxu0 0.0
      %389 = vmatprep.subr.mxu0 0.0
      %390 = vmatpush1.msra.mxu0 0.0
      %391 = vmatprep.subr.mxu0 0.0
      %392 = vmatpush1.msra.mxu0 0.0
      %393 = vmatprep.subr.mxu0 0.0
      %394 = vmatpush1.msra.mxu0 0.0
      %395 = vmatprep.subr.mxu0 0.0
      %396 = vmatpush1.msra.mxu0 0.0
      %397 = vmatprep.subr.mxu0 0.0
      %398 = vmatpush1.msra.mxu0 0.0
      %399 = vmatprep.subr.mxu0 0.0
      %400 = vmatpush1.msra.mxu0 0.0
      %401 = vmatprep.subr.mxu0 0.0
      %402 = vmatpush1.msra.mxu0 0.0
      %403 = vmatprep.subr.mxu0 0.0
      %404 = vmatpush1.msra.mxu0 0.0
      %405 = vmatprep.subr.mxu0 0.0
      %406 = vmatpush1.msra.mxu0 0.0
      %407 = vmatprep.subr.mxu0 0.0
      %408 = vmatpush1.msra.mxu0 0.0
      %409 = vmatprep.subr.mxu0 0.0
      %410 = vmatpush1.msra.mxu0 0.0
      %411 = vmatprep.subr.mxu0 0.0
      %412 = vmatpush1.msra.mxu0 0.0
      %413 = vmatprep.mubr.f32.mxu0 0.0
      %414 = vmatmul.mubr.f32.gmra.mrb[0].mxu0 %v322
      %v415 = vpop.f32.mrb[0].mxu0
      %v416 = vadd.f32 0.0, %v415
      %v417 = vpop.f32.mrb[0].mxu0
      %418 = vmatprep.mubr.f32.mxu0 0.0
      %419 = vmatmul.mubr.f32.gmra.mrb[0].mxu0 %v325
      %v420 = vpop.f32.mrb[0].mxu0
      %v421 = vadd.f32 0.0, %v420
      %v422 = vpop.f32.mrb[0].mxu0
      %423 = vmatprep.mubr.f32.mxu0 0.0
      %424 = vmatmul.mubr.f32.gmra.mrb[0].mxu0 %v328
      %v425 = vpop.f32.mrb[0].mxu0
      %v426 = vadd.f32 0.0, %v425
      %v427 = vpop.f32.mrb[0].mxu0
      %428 = vmatprep.mubr.f32.mxu0 0.0
      %429 = vmatmul.mubr.f32.gmra.mrb[0].mxu0 %v331
      %v430 = vpop.f32.mrb[0].mxu0
      %v431 = vadd.f32 0.0, %v430
      %v432 = vpop.f32.mrb[0].mxu0
      %433 = vmatprep.mubr.f32.mxu0 0.0
      %434 = vmatmul.mubr.f32.gmra.mrb[0].mxu0 %v334
      %v435 = vpop.f32.mrb[0].mxu0
      %v436 = vadd.f32 0.0, %v435
      %v437 = vpop.f32.mrb[0].mxu0
      %438 = vmatprep.mubr.f32.mxu0 0.0
      %439 = vmatmul.mubr.f32.gmra.mrb[0].mxu0 %v337
      %v440 = vpop.f32.mrb[0].mxu0
      %v441 = vadd.f32 0.0, %v440
      %v442 = vpop.f32.mrb[0].mxu0
      %443 = vmatprep.mubr.f32.mxu0 0.0
      %444 = vmatmul.mubr.f32.gmra.mrb[0].mxu0 %v340
      %v445 = vpop.f32.mrb[0].mxu0
      %v446 = vadd.f32 0.0, %v445
      %v447 = vpop.f32.mrb[0].mxu0
      %448 = vmatprep.mubr.f32.mxu0 0.0
      %449 = vmatmul.mubr.f32.gmra.mrb[0].mxu0 %v343
      %v450 = vpop.f32.mrb[0].mxu0
      %v451 = vadd.f32 0.0, %v450
      %v452 = vpop.f32.mrb[0].mxu0
      %453 = vdwg.mxu0
      %v454 = vld [vmem:[%s2] sm:$0xf]
      %v455 = vmul.f32 %v416, %v289
      %v456 = vmul.f32 %v421, %v290
      %v457 = vmul.f32 %v426, %v291
      %v458 = vmul.f32 %v431, %v292
      %v459 = vmul.f32 %v436, %v293
      %v460 = vmul.f32 %v441, %v294
      %v461 = vmul.f32 %v446, %v295
      %v462 = vmul.f32 %v451, %v296
      %v463 = vlaneseq
      %v464 = vshrl.u32 %v463, 7
      %v465 = vsub.s32 0, %v464
      %v466 = vrot.slane %v297, %v465
      %vm467 = vcmask 523264
      %v469 = vsel %vm467, %v454, 0
      %471 = vmatprep.subr.mxu0 0.0
      %472 = vmatpush1.msra.mxu0 %v455
      %473 = vmatprep.subr.mxu0 0.0
      %474 = vmatpush1.msra.mxu0 %v456
      %475 = vmatprep.subr.mxu0 0.0
      %476 = vmatpush1.msra.mxu0 %v457
      %477 = vmatprep.subr.mxu0 0.0
      %478 = vmatpush1.msra.mxu0 %v458
      %479 = vmatprep.subr.mxu0 0.0
      %480 = vmatpush1.msra.mxu0 %v459
      %481 = vmatprep.subr.mxu0 0.0
      %482 = vmatpush1.msra.mxu0 %v460
      %483 = vmatprep.subr.mxu0 0.0
      %484 = vmatpush1.msra.mxu0 %v461
      %485 = vmatprep.subr.mxu0 0.0
      %486 = vmatpush1.msra.mxu0 %v462
      %487 = vmatprep.subr.mxu0 0.0
      %488 = vmatpush1.msra.mxu0 0.0
      %489 = vmatprep.subr.mxu0 0.0
      %490 = vmatpush1.msra.mxu0 0.0
      %491 = vmatprep.subr.mxu0 0.0
      %492 = vmatpush1.msra.mxu0 0.0
      %493 = vmatprep.subr.mxu0 0.0
      %494 = vmatpush1.msra.mxu0 0.0
      %495 = vmatprep.subr.mxu0 0.0
      %496 = vmatpush1.msra.mxu0 0.0
      %497 = vmatprep.subr.mxu0 0.0
      %498 = vmatpush1.msra.mxu0 0.0
      %499 = vmatprep.subr.mxu0 0.0
      %500 = vmatpush1.msra.mxu0 0.0
      %501 = vmatprep.subr.mxu0 0.0
      %502 = vmatpush1.msra.mxu0 0.0
      %503 = vmatprep.subr.mxu0 0.0
      %504 = vmatpush1.msra.mxu0 0.0
      %505 = vmatprep.subr.mxu0 0.0
      %506 = vmatpush1.msra.mxu0 0.0
      %507 = vmatprep.subr.mxu0 0.0
      %508 = vmatpush1.msra.mxu0 0.0
      %509 = vmatprep.subr.mxu0 0.0
      %510 = vmatpush1.msra.mxu0 0.0
      %511 = vmatprep.subr.mxu0 0.0
      %512 = vmatpush1.msra.mxu0 0.0
      %513 = vmatprep.subr.mxu0 0.0
      %514 = vmatpush1.msra.mxu0 0.0
      %515 = vmatprep.subr.mxu0 0.0
      %516 = vmatpush1.msra.mxu0 0.0
      %517 = vmatprep.subr.mxu0 0.0
      %518 = vmatpush1.msra.mxu0 0.0
      %519 = vmatprep.subr.mxu0 0.0
      %520 = vmatpush1.msra.mxu0 0.0
      %521 = vmatprep.subr.mxu0 0.0
      %522 = vmatpush1.msra.mxu0 0.0
      %523 = vmatprep.subr.mxu0 0.0
      %524 = vmatpush1.msra.mxu0 0.0
      %525 = vmatprep.subr.mxu0 0.0
      %526 = vmatpush1.msra.mxu0 0.0
      %527 = vmatprep.subr.mxu0 0.0
      %528 = vmatpush1.msra.mxu0 0.0
      %529 = vmatprep.subr.mxu0 0.0
      %530 = vmatpush1.msra.mxu0 0.0
      %531 = vmatprep.subr.mxu0 0.0
      %532 = vmatpush1.msra.mxu0 0.0
      %533 = vmatprep.subr.mxu0 0.0
      %534 = vmatpush1.msra.mxu0 0.0
      %535 = vmatprep.mubr.f32.mxu0 0.0
      %536 = vmatmul.mubr.f32.gmra.mrb[0].mxu0 %v469
      %v537 = vpop.f32.mrb[0].mxu0
      %v538 = vadd.f32 %v466, %v537
      %v539 = vpop.f32.mrb[0].mxu0
      %540 = vdwg.mxu0
      %vm541 = vcmask 125952
      %v542 = vsel %vm541, %v538, 0.0
      %543 = vadd.xlane.f32.xlu0 %v542
      %v544 = vpop.xlane.xlu0 %543
      %v545 = vmul.f32 %v544, 0.0625
      %v546 = vmul.f32 %v538, %v538
      %v547 = vsel %vm541, %v546, 0.0
      %548 = vadd.xlane.f32.xlu0 %v547
      %v549 = vpop.xlane.xlu0 %548
      %v550 = vmul.f32 %v549, 0.0625
      %v551 = vsub.f32 %v538, %v545
      %v552 = vmul.f32 %v545, %v545
      %v553 = vsub.f32 %v550, %v552
      %v554 = vadd.f32 %v553, 1e-05
      %v555 = vrsqrt.pop %v554
      %v556 = vmul.f32 %v551, %v555
      %v557 = vlaneseq
      %v558 = vshrl.u32 %v557, 7
      %v559 = vsub.s32 0, %v558
      %v560 = vrot.slane %v298, %v559
      %v561 = vmul.f32 %v556, %v560
      %v562 = vlaneseq
      %v563 = vshrl.u32 %v562, 7
      %v564 = vsub.s32 0, %v563
      %v565 = vrot.slane %v299, %v564
      %v566 = vadd.f32 %v561, %v565
      %v567 = vlaneseq
      %v568 = vshrl.u32 %v567, 7
      %v569 = vsub.s32 0, %v568
      %v570 = vrot.slane %v288, %v569
      %vm571 = vcmask 130048
      %v573 = vsel %vm571, %v279, 0
      %v576 = vsel %vm571, %v280, 0
      %v579 = vsel %vm571, %v281, 0
      %v582 = vsel %vm571, %v282, 0
      %v585 = vsel %vm571, %v283, 0
      %v588 = vsel %vm571, %v284, 0
      %v590 = vsel %vm571, %v285, 0
      %592 = vmatprep.subr.mxu0 0.0
      %593 = vmatpush1.msra.mxu0 %v286
      %594 = vmatprep.subr.mxu0 0.0
      %595 = vmatpush1.msra.mxu0 %v287
      %596 = vmatprep.subr.mxu0 0.0
      %597 = vmatpush1.msra.mxu0 0.0
      %598 = vmatprep.subr.mxu0 0.0
      %599 = vmatpush1.msra.mxu0 0.0
      %600 = vmatprep.subr.mxu0 0.0
      %601 = vmatpush1.msra.mxu0 0.0
      %602 = vmatprep.subr.mxu0 0.0
      %603 = vmatpush1.msra.mxu0 0.0
      %604 = vmatprep.subr.mxu0 0.0
      %605 = vmatpush1.msra.mxu0 0.0
      %606 = vmatprep.subr.mxu0 0.0
      %607 = vmatpush1.msra.mxu0 0.0
      %608 = vmatprep.subr.mxu0 0.0
      %609 = vmatpush1.msra.mxu0 0.0
      %610 = vmatprep.subr.mxu0 0.0
      %611 = vmatpush1.msra.mxu0 0.0
      %612 = vmatprep.subr.mxu0 0.0
      %613 = vmatpush1.msra.mxu0 0.0
      %614 = vmatprep.subr.mxu0 0.0
      %615 = vmatpush1.msra.mxu0 0.0
      %616 = vmatprep.subr.mxu0 0.0
      %617 = vmatpush1.msra.mxu0 0.0
      %618 = vmatprep.subr.mxu0 0.0
      %619 = vmatpush1.msra.mxu0 0.0
      %620 = vmatprep.subr.mxu0 0.0
      %621 = vmatpush1.msra.mxu0 0.0
      %622 = vmatprep.subr.mxu0 0.0
      %623 = vmatpush1.msra.mxu0 0.0
      %624 = vmatprep.subr.mxu0 0.0
      %625 = vmatpush1.msra.mxu0 0.0
      %626 = vmatprep.subr.mxu0 0.0
      %627 = vmatpush1.msra.mxu0 0.0
      %628 = vmatprep.subr.mxu0 0.0
      %629 = vmatpush1.msra.mxu0 0.0
      %630 = vmatprep.subr.mxu0 0.0
      %631 = vmatpush1.msra.mxu0 0.0
      %632 = vmatprep.subr.mxu0 0.0
      %633 = vmatpush1.msra.mxu0 0.0
      %634 = vmatprep.subr.mxu0 0.0
      %635 = vmatpush1.msra.mxu0 0.0
      %636 = vmatprep.subr.mxu0 0.0
      %637 = vmatpush1.msra.mxu0 0.0
      %638 = vmatprep.subr.mxu0 0.0
      %639 = vmatpush1.msra.mxu0 0.0
      %640 = vmatprep.subr.mxu0 0.0
      %641 = vmatpush1.msra.mxu0 0.0
      %642 = vmatprep.subr.mxu0 0.0
      %643 = vmatpush1.msra.mxu0 0.0
      %644 = vmatprep.subr.mxu0 0.0
      %645 = vmatpush1.msra.mxu0 0.0
      %646 = vmatprep.subr.mxu0 0.0
      %647 = vmatpush1.msra.mxu0 0.0
      %648 = vmatprep.subr.mxu0 0.0
      %649 = vmatpush1.msra.mxu0 0.0
      %650 = vmatprep.subr.mxu0 0.0
      %651 = vmatpush1.msra.mxu0 0.0
      %652 = vmatprep.subr.mxu0 0.0
      %653 = vmatpush1.msra.mxu0 0.0
      %654 = vmatprep.subr.mxu0 0.0
      %655 = vmatpush1.msra.mxu0 0.0
      %656 = vmatprep.mubr.f32.mxu0 0.0
      %657 = vmatmul.mubr.f32.gmra.mrb[0].mxu0 %v573
      %v658 = vpop.f32.mrb[0].mxu0
      %v659 = vadd.f32 %v570, %v658
      %v660 = vpop.f32.mrb[0].mxu0
      %661 = vmatprep.mubr.f32.mxu0 0.0
      %662 = vmatmul.mubr.f32.gmra.mrb[0].mxu0 %v576
      %v663 = vpop.f32.mrb[0].mxu0
      %v664 = vadd.f32 %v570, %v663
      %v665 = vpop.f32.mrb[0].mxu0
      %666 = vmatprep.mubr.f32.mxu0 0.0
      %667 = vmatmul.mubr.f32.gmra.mrb[0].mxu0 %v579
      %v668 = vpop.f32.mrb[0].mxu0
      %v669 = vadd.f32 %v570, %v668
      %v670 = vpop.f32.mrb[0].mxu0
      %671 = vmatprep.mubr.f32.mxu0 0.0
      %672 = vmatmul.mubr.f32.gmra.mrb[0].mxu0 %v582
      %v673 = vpop.f32.mrb[0].mxu0
      %v674 = vadd.f32 %v570, %v673
      %v675 = vpop.f32.mrb[0].mxu0
      %676 = vmatprep.mubr.f32.mxu0 0.0
      %677 = vmatmul.mubr.f32.gmra.mrb[0].mxu0 %v585
      %v678 = vpop.f32.mrb[0].mxu0
      %v679 = vadd.f32 %v570, %v678
      %v680 = vpop.f32.mrb[0].mxu0
      %681 = vmatprep.mubr.f32.mxu0 0.0
      %682 = vmatmul.mubr.f32.gmra.mrb[0].mxu0 %v588
      %v683 = vpop.f32.mrb[0].mxu0
      %v684 = vadd.f32 %v570, %v683
      %v685 = vpop.f32.mrb[0].mxu0
      %686 = vmatprep.mubr.f32.mxu0 0.0
      %687 = vmatmul.mubr.f32.gmra.mrb[0].mxu0 %v590
      %v688 = vpop.f32.mrb[0].mxu0
      %v689 = vadd.f32 %v570, %v688
      %v690 = vpop.f32.mrb[0].mxu0
      %691 = vdwg.mxu0
      %vm692 = vcmask 31744
      %v694 = vsel %vm692, %v310, 0
      %v697 = vsel %vm692, %v311, 0
      %vm699 = vcmask 1043456
      %v701 = vsel %vm699, %v566, 0
      %703 = vmatprep.subr.mxu0 0.0
      %704 = vmatpush1.msra.mxu0 %v701
      %705 = vmatprep.subr.mxu0 0.0
      %706 = vmatpush1.msra.mxu0 0.0
      %707 = vmatprep.subr.mxu0 0.0
      %708 = vmatpush1.msra.mxu0 0.0
      %709 = vmatprep.subr.mxu0 0.0
      %710 = vmatpush1.msra.mxu0 0.0
      %711 = vmatprep.subr.mxu0 0.0
      %712 = vmatpush1.msra.mxu0 0.0
      %713 = vmatprep.subr.mxu0 0.0
      %714 = vmatpush1.msra.mxu0 0.0
      %715 = vmatprep.subr.mxu0 0.0
      %716 = vmatpush1.msra.mxu0 0.0
      %717 = vmatprep.subr.mxu0 0.0
      %718 = vmatpush1.msra.mxu0 0.0
      %719 = vmatprep.subr.mxu0 0.0
      %720 = vmatpush1.msra.mxu0 0.0
      %721 = vmatprep.subr.mxu0 0.0
      %722 = vmatpush1.msra.mxu0 0.0
      %723 = vmatprep.subr.mxu0 0.0
      %724 = vmatpush1.msra.mxu0 0.0
      %725 = vmatprep.subr.mxu0 0.0
      %726 = vmatpush1.msra.mxu0 0.0
      %727 = vmatprep.subr.mxu0 0.0
      %728 = vmatpush1.msra.mxu0 0.0
      %729 = vmatprep.subr.mxu0 0.0
      %730 = vmatpush1.msra.mxu0 0.0
      %731 = vmatprep.subr.mxu0 0.0
      %732 = vmatpush1.msra.mxu0 0.0
      %733 = vmatprep.subr.mxu0 0.0
      %734 = vmatpush1.msra.mxu0 0.0
      %735 = vmatprep.subr.mxu0 0.0
      %736 = vmatpush1.msra.mxu0 0.0
      %737 = vmatprep.subr.mxu0 0.0
      %738 = vmatpush1.msra.mxu0 0.0
      %739 = vmatprep.subr.mxu0 0.0
      %740 = vmatpush1.msra.mxu0 0.0
      %741 = vmatprep.subr.mxu0 0.0
      %742 = vmatpush1.msra.mxu0 0.0
      %743 = vmatprep.subr.mxu0 0.0
      %744 = vmatpush1.msra.mxu0 0.0
      %745 = vmatprep.subr.mxu0 0.0
      %746 = vmatpush1.msra.mxu0 0.0
      %747 = vmatprep.subr.mxu0 0.0
      %748 = vmatpush1.msra.mxu0 0.0
      %749 = vmatprep.subr.mxu0 0.0
      %750 = vmatpush1.msra.mxu0 0.0
      %751 = vmatprep.subr.mxu0 0.0
      %752 = vmatpush1.msra.mxu0 0.0
      %753 = vmatprep.subr.mxu0 0.0
      %754 = vmatpush1.msra.mxu0 0.0
      %755 = vmatprep.subr.mxu0 0.0
      %756 = vmatpush1.msra.mxu0 0.0
      %757 = vmatprep.subr.mxu0 0.0
      %758 = vmatpush1.msra.mxu0 0.0
      %759 = vmatprep.subr.mxu0 0.0
      %760 = vmatpush1.msra.mxu0 0.0
      %761 = vmatprep.subr.mxu0 0.0
      %762 = vmatpush1.msra.mxu0 0.0
      %763 = vmatprep.subr.mxu0 0.0
      %764 = vmatpush1.msra.mxu0 0.0
      %765 = vmatprep.subr.mxu0 0.0
      %766 = vmatpush1.msra.mxu0 0.0
      %767 = vmatprep.mubr.f32.mxu0 0.0
      %768 = vmatmul.mubr.f32.gmra.mrb[0].mxu0 %v694
      %v769 = vpop.f32.mrb[0].mxu0
      %v770 = vadd.f32 0.0, %v769
      %v771 = vpop.f32.mrb[0].mxu0
      %772 = vmatprep.mubr.f32.mxu0 0.0
      %773 = vmatmul.mubr.f32.gmra.mrb[0].mxu0 %v697
      %v774 = vpop.f32.mrb[0].mxu0
      %v775 = vadd.f32 0.0, %v774
      %v776 = vpop.f32.mrb[0].mxu0
      %777 = vdwg.mxu0
      %780 = vrot.lane.b32.xlu0 %v286, 96
      %v781 = vpop.permute.xlu0 %780
      %782 = vrot.lane.b32.xlu0 %v287, 96
      %v783 = vpop.permute.xlu0 %782
      %787 = vrot.lane.b32.xlu0 %v570, 96
      %v788 = vpop.permute.xlu0 %787
      %v791 = vsel %vm571, %v770, 0
      %v794 = vsel %vm571, %v775, 0
      %796 = vmatprep.subr.mxu0 0.0
      %797 = vmatpush1.msra.mxu0 %v781
      %798 = vmatprep.subr.mxu0 0.0
      %799 = vmatpush1.msra.mxu0 %v783
      %800 = vmatprep.subr.mxu0 0.0
      %801 = vmatpush1.msra.mxu0 0.0
      %802 = vmatprep.subr.mxu0 0.0
      %803 = vmatpush1.msra.mxu0 0.0
      %804 = vmatprep.subr.mxu0 0.0
      %805 = vmatpush1.msra.mxu0 0.0
      %806 = vmatprep.subr.mxu0 0.0
      %807 = vmatpush1.msra.mxu0 0.0
      %808 = vmatprep.subr.mxu0 0.0
      %809 = vmatpush1.msra.mxu0 0.0
      %810 = vmatprep.subr.mxu0 0.0
      %811 = vmatpush1.msra.mxu0 0.0
      %812 = vmatprep.subr.mxu0 0.0
      %813 = vmatpush1.msra.mxu0 0.0
      %814 = vmatprep.subr.mxu0 0.0
      %815 = vmatpush1.msra.mxu0 0.0
      %816 = vmatprep.subr.mxu0 0.0
      %817 = vmatpush1.msra.mxu0 0.0
      %818 = vmatprep.subr.mxu0 0.0
      %819 = vmatpush1.msra.mxu0 0.0
      %820 = vmatprep.subr.mxu0 0.0
      %821 = vmatpush1.msra.mxu0 0.0
      %822 = vmatprep.subr.mxu0 0.0
      %823 = vmatpush1.msra.mxu0 0.0
      %824 = vmatprep.subr.mxu0 0.0
      %825 = vmatpush1.msra.mxu0 0.0
      %826 = vmatprep.subr.mxu0 0.0
      %827 = vmatpush1.msra.mxu0 0.0
      %828 = vmatprep.subr.mxu0 0.0
      %829 = vmatpush1.msra.mxu0 0.0
      %830 = vmatprep.subr.mxu0 0.0
      %831 = vmatpush1.msra.mxu0 0.0
      %832 = vmatprep.subr.mxu0 0.0
      %833 = vmatpush1.msra.mxu0 0.0
      %834 = vmatprep.subr.mxu0 0.0
      %835 = vmatpush1.msra.mxu0 0.0
      %836 = vmatprep.subr.mxu0 0.0
      %837 = vmatpush1.msra.mxu0 0.0
      %838 = vmatprep.subr.mxu0 0.0
      %839 = vmatpush1.msra.mxu0 0.0
      %840 = vmatprep.subr.mxu0 0.0
      %841 = vmatpush1.msra.mxu0 0.0
      %842 = vmatprep.subr.mxu0 0.0
      %843 = vmatpush1.msra.mxu0 0.0
      %844 = vmatprep.subr.mxu0 0.0
      %845 = vmatpush1.msra.mxu0 0.0
      %846 = vmatprep.subr.mxu0 0.0
      %847 = vmatpush1.msra.mxu0 0.0
      %848 = vmatprep.subr.mxu0 0.0
      %849 = vmatpush1.msra.mxu0 0.0
      %850 = vmatprep.subr.mxu0 0.0
      %851 = vmatpush1.msra.mxu0 0.0
      %852 = vmatprep.subr.mxu0 0.0
      %853 = vmatpush1.msra.mxu0 0.0
      %854 = vmatprep.subr.mxu0 0.0
      %855 = vmatpush1.msra.mxu0 0.0
      %856 = vmatprep.subr.mxu0 0.0
      %857 = vmatpush1.msra.mxu0 0.0
      %858 = vmatprep.subr.mxu0 0.0
      %859 = vmatpush1.msra.mxu0 0.0
      %860 = vmatprep.mubr.f32.mxu0 0.0
      %861 = vmatmul.mubr.f32.gmra.mrb[0].mxu0 %v791
      %v862 = vpop.f32.mrb[0].mxu0
      %v863 = vadd.f32 %v788, %v862
      %v864 = vpop.f32.mrb[0].mxu0
      %865 = vmatprep.mubr.f32.mxu0 0.0
      %866 = vmatmul.mubr.f32.gmra.mrb[0].mxu0 %v794
      %v867 = vpop.f32.mrb[0].mxu0
      %v868 = vadd.f32 %v788, %v867
      %v869 = vpop.f32.mrb[0].mxu0
      %870 = vdwg.mxu0
      %871 = vrot.lane.b32.xlu0 %v310, 124
      %v872 = vpop.permute.xlu0 %871
      %873 = vrot.lane.b32.xlu0 %v311, 124
      %v874 = vpop.permute.xlu0 %873
      %v877 = vmul.f32 %v863, %v872
      %v878 = vmul.f32 %v868, %v874
      %vm879 = vcmask 261120
      %v881 = vsel %vm879, %v659, 0
      %v884 = vsel %vm879, %v664, 0
      %v887 = vsel %vm879, %v669, 0
      %v890 = vsel %vm879, %v674, 0
      %v893 = vsel %vm879, %v679, 0
      %v896 = vsel %vm879, %v684, 0
      %v899 = vsel %vm879, %v689, 0
      %v902 = vsel %vm879, %v877, 0
      %v905 = vsel %vm879, %v878, 0
      %907 = vmatprep.subr.mxu0 0.0
      %908 = vmatpush1.xpose.msra.mxu0 %v902
      %909 = vmatprep.subr.mxu0 0.0
      %910 = vmatpush1.xpose.msra.mxu0 %v905
      %911 = vmatprep.subr.mxu0 0.0
      %912 = vmatpush1.xpose.msra.mxu0 0.0
      %913 = vmatprep.subr.mxu0 0.0
      %914 = vmatpush1.xpose.msra.mxu0 0.0
      %915 = vmatprep.subr.mxu0 0.0
      %916 = vmatpush1.xpose.msra.mxu0 0.0
      %917 = vmatprep.subr.mxu0 0.0
      %918 = vmatpush1.xpose.msra.mxu0 0.0
      %919 = vmatprep.subr.mxu0 0.0
      %920 = vmatpush1.xpose.msra.mxu0 0.0
      %921 = vmatprep.subr.mxu0 0.0
      %922 = vmatpush1.xpose.msra.mxu0 0.0
      %923 = vmatprep.subr.mxu0 0.0
      %924 = vmatpush1.xpose.msra.mxu0 0.0
      %925 = vmatprep.subr.mxu0 0.0
      %926 = vmatpush1.xpose.msra.mxu0 0.0
      %927 = vmatprep.subr.mxu0 0.0
      %928 = vmatpush1.xpose.msra.mxu0 0.0
      %929 = vmatprep.subr.mxu0 0.0
      %930 = vmatpush1.xpose.msra.mxu0 0.0
      %931 = vmatprep.subr.mxu0 0.0
      %932 = vmatpush1.xpose.msra.mxu0 0.0
      %933 = vmatprep.subr.mxu0 0.0
      %934 = vmatpush1.xpose.msra.mxu0 0.0
      %935 = vmatprep.subr.mxu0 0.0
      %936 = vmatpush1.xpose.msra.mxu0 0.0
      %937 = vmatprep.subr.mxu0 0.0
      %938 = vmatpush1.xpose.msra.mxu0 0.0
      %939 = vmatprep.subr.mxu0 0.0
      %940 = vmatpush1.xpose.msra.mxu0 0.0
      %941 = vmatprep.subr.mxu0 0.0
      %942 = vmatpush1.xpose.msra.mxu0 0.0
      %943 = vmatprep.subr.mxu0 0.0
      %944 = vmatpush1.xpose.msra.mxu0 0.0
      %945 = vmatprep.subr.mxu0 0.0
      %946 = vmatpush1.xpose.msra.mxu0 0.0
      %947 = vmatprep.subr.mxu0 0.0
      %948 = vmatpush1.xpose.msra.mxu0 0.0
      %949 = vmatprep.subr.mxu0 0.0
      %950 = vmatpush1.xpose.msra.mxu0 0.0
      %951 = vmatprep.subr.mxu0 0.0
      %952 = vmatpush1.xpose.msra.mxu0 0.0
      %953 = vmatprep.subr.mxu0 0.0
      %954 = vmatpush1.xpose.msra.mxu0 0.0
      %955 = vmatprep.subr.mxu0 0.0
      %956 = vmatpush1.xpose.msra.mxu0 0.0
      %957 = vmatprep.subr.mxu0 0.0
      %958 = vmatpush1.xpose.msra.mxu0 0.0
      %959 = vmatprep.subr.mxu0 0.0
      %960 = vmatpush1.xpose.msra.mxu0 0.0
      %961 = vmatprep.subr.mxu0 0.0
      %962 = vmatpush1.xpose.msra.mxu0 0.0
      %963 = vmatprep.subr.mxu0 0.0
      %964 = vmatpush1.xpose.msra.mxu0 0.0
      %965 = vmatprep.subr.mxu0 0.0
      %966 = vmatpush1.xpose.msra.mxu0 0.0
      %967 = vmatprep.subr.mxu0 0.0
      %968 = vmatpush1.xpose.msra.mxu0 0.0
      %969 = vmatprep.subr.mxu0 0.0
      %970 = vmatpush1.xpose.msra.mxu0 0.0
      %971 = vmatprep.mubr.f32.mxu0 0.0
      %972 = vmatmul.mubr.f32.gmra.mrb[0].mxu0 %v881
      %v973 = vpop.f32.mrb[0].mxu0
      %v974 = vadd.f32 0.0, %v973
      %v975 = vpop.f32.mrb[0].mxu0
      %976 = vmatprep.mubr.f32.mxu0 0.0
      %977 = vmatmul.mubr.f32.gmra.mrb[0].mxu0 %v884
      %v978 = vpop.f32.mrb[0].mxu0
      %v979 = vadd.f32 0.0, %v978
      %v980 = vpop.f32.mrb[0].mxu0
      %981 = vmatprep.mubr.f32.mxu0 0.0
      %982 = vmatmul.mubr.f32.gmra.mrb[0].mxu0 %v887
      %v983 = vpop.f32.mrb[0].mxu0
      %v984 = vadd.f32 0.0, %v983
      %v985 = vpop.f32.mrb[0].mxu0
      %986 = vmatprep.mubr.f32.mxu0 0.0
      %987 = vmatmul.mubr.f32.gmra.mrb[0].mxu0 %v890
      %v988 = vpop.f32.mrb[0].mxu0
      %v989 = vadd.f32 0.0, %v988
      %v990 = vpop.f32.mrb[0].mxu0
      %991 = vmatprep.mubr.f32.mxu0 0.0
      %992 = vmatmul.mubr.f32.gmra.mrb[0].mxu0 %v893
      %v993 = vpop.f32.mrb[0].mxu0
      %v994 = vadd.f32 0.0, %v993
      %v995 = vpop.f32.mrb[0].mxu0
      %996 = vmatprep.mubr.f32.mxu0 0.0
      %997 = vmatmul.mubr.f32.gmra.mrb[0].mxu0 %v896
      %v998 = vpop.f32.mrb[0].mxu0
      %v999 = vadd.f32 0.0, %v998
      %v1000 = vpop.f32.mrb[0].mxu0
      %1001 = vmatprep.mubr.f32.mxu0 0.0
      %1002 = vmatmul.mubr.f32.gmra.mrb[0].mxu0 %v899
      %v1003 = vpop.f32.mrb[0].mxu0
      %v1004 = vadd.f32 0.0, %v1003
      %v1005 = vpop.f32.mrb[0].mxu0
      %1006 = vdwg.mxu0
      %v1007 = vlaneseq
      %v1008 = vshrl.u32 %v1007, 7
      %v1009 = vsub.s32 0, %v1008
      %v1010 = vrot.slane %v307, %v1009
      %v1012 = vsel %vm571, %v974, 0
      %v1015 = vsel %vm571, %v979, 0
      %v1018 = vsel %vm571, %v984, 0
      %v1021 = vsel %vm571, %v989, 0
      %v1024 = vsel %vm571, %v994, 0
      %v1027 = vsel %vm571, %v999, 0
      %v1030 = vsel %vm571, %v1004, 0
      %1032 = vmatprep.subr.mxu0 0.0
      %1033 = vmatpush1.msra.mxu0 %v305
      %1034 = vmatprep.subr.mxu0 0.0
      %1035 = vmatpush1.msra.mxu0 %v306
      %1036 = vmatprep.subr.mxu0 0.0
      %1037 = vmatpush1.msra.mxu0 0.0
      %1038 = vmatprep.subr.mxu0 0.0
      %1039 = vmatpush1.msra.mxu0 0.0
      %1040 = vmatprep.subr.mxu0 0.0
      %1041 = vmatpush1.msra.mxu0 0.0
      %1042 = vmatprep.subr.mxu0 0.0
      %1043 = vmatpush1.msra.mxu0 0.0
      %1044 = vmatprep.subr.mxu0 0.0
      %1045 = vmatpush1.msra.mxu0 0.0
      %1046 = vmatprep.subr.mxu0 0.0
      %1047 = vmatpush1.msra.mxu0 0.0
      %1048 = vmatprep.subr.mxu0 0.0
      %1049 = vmatpush1.msra.mxu0 0.0
      %1050 = vmatprep.subr.mxu0 0.0
      %1051 = vmatpush1.msra.mxu0 0.0
      %1052 = vmatprep.subr.mxu0 0.0
      %1053 = vmatpush1.msra.mxu0 0.0
      %1054 = vmatprep.subr.mxu0 0.0
      %1055 = vmatpush1.msra.mxu0 0.0
      %1056 = vmatprep.subr.mxu0 0.0
      %1057 = vmatpush1.msra.mxu0 0.0
      %1058 = vmatprep.subr.mxu0 0.0
      %1059 = vmatpush1.msra.mxu0 0.0
      %1060 = vmatprep.subr.mxu0 0.0
      %1061 = vmatpush1.msra.mxu0 0.0
      %1062 = vmatprep.subr.mxu0 0.0
      %1063 = vmatpush1.msra.mxu0 0.0
      %1064 = vmatprep.subr.mxu0 0.0
      %1065 = vmatpush1.msra.mxu0 0.0
      %1066 = vmatprep.subr.mxu0 0.0
      %1067 = vmatpush1.msra.mxu0 0.0
      %1068 = vmatprep.subr.mxu0 0.0
      %1069 = vmatpush1.msra.mxu0 0.0
      %1070 = vmatprep.subr.mxu0 0.0
      %1071 = vmatpush1.msra.mxu0 0.0
      %1072 = vmatprep.subr.mxu0 0.0
      %1073 = vmatpush1.msra.mxu0 0.0
      %1074 = vmatprep.subr.mxu0 0.0
      %1075 = vmatpush1.msra.mxu0 0.0
      %1076 = vmatprep.subr.mxu0 0.0
      %1077 = vmatpush1.msra.mxu0 0.0
      %1078 = vmatprep.subr.mxu0 0.0
      %1079 = vmatpush1.msra.mxu0 0.0
      %1080 = vmatprep.subr.mxu0 0.0
      %1081 = vmatpush1.msra.mxu0 0.0
      %1082 = vmatprep.subr.mxu0 0.0
      %1083 = vmatpush1.msra.mxu0 0.0
      %1084 = vmatprep.subr.mxu0 0.0
      %1085 = vmatpush1.msra.mxu0 0.0
      %1086 = vmatprep.subr.mxu0 0.0
      %1087 = vmatpush1.msra.mxu0 0.0
      %1088 = vmatprep.subr.mxu0 0.0
      %1089 = vmatpush1.msra.mxu0 0.0
      %1090 = vmatprep.subr.mxu0 0.0
      %1091 = vmatpush1.msra.mxu0 0.0
      %1092 = vmatprep.subr.mxu0 0.0
      %1093 = vmatpush1.msra.mxu0 0.0
      %1094 = vmatprep.subr.mxu0 0.0
      %1095 = vmatpush1.msra.mxu0 0.0
      %1096 = vmatprep.mubr.f32.mxu0 0.0
      %1097 = vmatmul.mubr.f32.gmra.mrb[0].mxu0 %v1012
      %v1098 = vpop.f32.mrb[0].mxu0
      %v1099 = vadd.f32 %v1010, %v1098
      %v1100 = vpop.f32.mrb[0].mxu0
      %1101 = vmatprep.mubr.f32.mxu0 0.0
      %1102 = vmatmul.mubr.f32.gmra.mrb[0].mxu0 %v1015
      %v1103 = vpop.f32.mrb[0].mxu0
      %v1104 = vadd.f32 %v1010, %v1103
      %v1105 = vpop.f32.mrb[0].mxu0
      %1106 = vmatprep.mubr.f32.mxu0 0.0
      %1107 = vmatmul.mubr.f32.gmra.mrb[0].mxu0 %v1018
      %v1108 = vpop.f32.mrb[0].mxu0
      %v1109 = vadd.f32 %v1010, %v1108
      %v1110 = vpop.f32.mrb[0].mxu0
      %1111 = vmatprep.mubr.f32.mxu0 0.0
      %1112 = vmatmul.mubr.f32.gmra.mrb[0].mxu0 %v1021
      %v1113 = vpop.f32.mrb[0].mxu0
      %v1114 = vadd.f32 %v1010, %v1113
      %v1115 = vpop.f32.mrb[0].mxu0
      %1116 = vmatprep.mubr.f32.mxu0 0.0
      %1117 = vmatmul.mubr.f32.gmra.mrb[0].mxu0 %v1024
      %v1118 = vpop.f32.mrb[0].mxu0
      %v1119 = vadd.f32 %v1010, %v1118
      %v1120 = vpop.f32.mrb[0].mxu0
      %1121 = vmatprep.mubr.f32.mxu0 0.0
      %1122 = vmatmul.mubr.f32.gmra.mrb[0].mxu0 %v1027
      %v1123 = vpop.f32.mrb[0].mxu0
      %v1124 = vadd.f32 %v1010, %v1123
      %v1125 = vpop.f32.mrb[0].mxu0
      %1126 = vmatprep.mubr.f32.mxu0 0.0
      %1127 = vmatmul.mubr.f32.gmra.mrb[0].mxu0 %v1030
      %v1128 = vpop.f32.mrb[0].mxu0
      %v1129 = vadd.f32 %v1010, %v1128
      %v1130 = vpop.f32.mrb[0].mxu0
      %1131 = vdwg.mxu0
      %v1132 = vsel %vm571, %v1099, -inf
      %1133 = vmax.xlane.f32.xlu0 %v1132
      %v1134 = vpop.xlane.xlu0 %1133
      %v1135 = vsel %vm571, %v1104, -inf
      %1136 = vmax.xlane.f32.xlu0 %v1135
      %v1137 = vpop.xlane.xlu0 %1136
      %v1138 = vsel %vm571, %v1109, -inf
      %1139 = vmax.xlane.f32.xlu0 %v1138
      %v1140 = vpop.xlane.xlu0 %1139
      %v1141 = vsel %vm571, %v1114, -inf
      %1142 = vmax.xlane.f32.xlu0 %v1141
      %v1143 = vpop.xlane.xlu0 %1142
      %v1144 = vsel %vm571, %v1119, -inf
      %1145 = vmax.xlane.f32.xlu0 %v1144
      %v1146 = vpop.xlane.xlu0 %1145
      %v1147 = vsel %vm571, %v1124, -inf
      %1148 = vmax.xlane.f32.xlu0 %v1147
      %v1149 = vpop.xlane.xlu0 %1148
      %vm1150 = vcmask 122880
      %v1151 = vsel %vm1150, %v1129, -inf
      %1152 = vmax.xlane.f32.xlu0 %v1151
      %v1153 = vpop.xlane.xlu0 %1152
      %v1154 = vsub.f32 %v1099, %v1134
      %v1155 = vsub.f32 %v1104, %v1137
      %v1156 = vsub.f32 %v1109, %v1140
      %v1157 = vsub.f32 %v1114, %v1143
      %v1158 = vsub.f32 %v1119, %v1146
      %v1159 = vsub.f32 %v1124, %v1149
      %v1160 = vsub.f32 %v1129, %v1153
      %v1161 = vmul.f32 %v1154, 1.442695
      %v1162 = vpow.pop %v1161
      %v1163 = vmul.f32 %v1155, 1.442695
      %v1164 = vpow.pop %v1163
      %v1165 = vmul.f32 %v1156, 1.442695
      %v1166 = vpow.pop %v1165
      %v1167 = vmul.f32 %v1157, 1.442695
      %v1168 = vpow.pop %v1167
      %v1169 = vmul.f32 %v1158, 1.442695
      %v1170 = vpow.pop %v1169
      %v1171 = vmul.f32 %v1159, 1.442695
      %v1172 = vpow.pop %v1171
      %v1173 = vmul.f32 %v1160, 1.442695
      %v1174 = vpow.pop %v1173
      %v1176 = vsel %vm571, %v1162, 0
      %v1179 = vsel %vm571, %v1164, 0
      %v1182 = vsel %vm571, %v1166, 0
      %v1185 = vsel %vm571, %v1168, 0
      %v1188 = vsel %vm571, %v1170, 0
      %v1191 = vsel %vm571, %v1172, 0
      %v1194 = vsel %vm571, %v1174, 0
      %1196 = vmatprep.subr.mxu0 0.0
      %1197 = vmatpush1.msra.mxu0 %v308
      %1198 = vmatprep.subr.mxu0 0.0
      %1199 = vmatpush1.msra.mxu0 %v309
      %1200 = vmatprep.subr.mxu0 0.0
      %1201 = vmatpush1.msra.mxu0 0.0
      %1202 = vmatprep.subr.mxu0 0.0
      %1203 = vmatpush1.msra.mxu0 0.0
      %1204 = vmatprep.subr.mxu0 0.0
      %1205 = vmatpush1.msra.mxu0 0.0
      %1206 = vmatprep.subr.mxu0 0.0
      %1207 = vmatpush1.msra.mxu0 0.0
      %1208 = vmatprep.subr.mxu0 0.0
      %1209 = vmatpush1.msra.mxu0 0.0
      %1210 = vmatprep.subr.mxu0 0.0
      %1211 = vmatpush1.msra.mxu0 0.0
      %1212 = vmatprep.subr.mxu0 0.0
      %1213 = vmatpush1.msra.mxu0 0.0
      %1214 = vmatprep.subr.mxu0 0.0
      %1215 = vmatpush1.msra.mxu0 0.0
      %1216 = vmatprep.subr.mxu0 0.0
      %1217 = vmatpush1.msra.mxu0 0.0
      %1218 = vmatprep.subr.mxu0 0.0
      %1219 = vmatpush1.msra.mxu0 0.0
      %1220 = vmatprep.subr.mxu0 0.0
      %1221 = vmatpush1.msra.mxu0 0.0
      %1222 = vmatprep.subr.mxu0 0.0
      %1223 = vmatpush1.msra.mxu0 0.0
      %1224 = vmatprep.subr.mxu0 0.0
      %1225 = vmatpush1.msra.mxu0 0.0
      %1226 = vmatprep.subr.mxu0 0.0
      %1227 = vmatpush1.msra.mxu0 0.0
      %1228 = vmatprep.subr.mxu0 0.0
      %1229 = vmatpush1.msra.mxu0 0.0
      %1230 = vmatprep.subr.mxu0 0.0
      %1231 = vmatpush1.msra.mxu0 0.0
      %1232 = vmatprep.subr.mxu0 0.0
      %1233 = vmatpush1.msra.mxu0 0.0
      %1234 = vmatprep.subr.mxu0 0.0
      %1235 = vmatpush1.msra.mxu0 0.0
      %1236 = vmatprep.subr.mxu0 0.0
      %1237 = vmatpush1.msra.mxu0 0.0
      %1238 = vmatprep.subr.mxu0 0.0
      %1239 = vmatpush1.msra.mxu0 0.0
      %1240 = vmatprep.subr.mxu0 0.0
      %1241 = vmatpush1.msra.mxu0 0.0
      %1242 = vmatprep.subr.mxu0 0.0
      %1243 = vmatpush1.msra.mxu0 0.0
      %1244 = vmatprep.subr.mxu0 0.0
      %1245 = vmatpush1.msra.mxu0 0.0
      %1246 = vmatprep.subr.mxu0 0.0
      %1247 = vmatpush1.msra.mxu0 0.0
      %1248 = vmatprep.subr.mxu0 0.0
      %1249 = vmatpush1.msra.mxu0 0.0
      %1250 = vmatprep.subr.mxu0 0.0
      %1251 = vmatpush1.msra.mxu0 0.0
      %1252 = vmatprep.subr.mxu0 0.0
      %1253 = vmatpush1.msra.mxu0 0.0
      %1254 = vmatprep.subr.mxu0 0.0
      %1255 = vmatpush1.msra.mxu0 0.0
      %1256 = vmatprep.subr.mxu0 0.0
      %1257 = vmatpush1.msra.mxu0 0.0
      %1258 = vmatprep.subr.mxu0 0.0
      %1259 = vmatpush1.msra.mxu0 0.0
      %1260 = vmatprep.mubr.f32.mxu0 0.0
      %1261 = vmatmul.mubr.f32.gmra.mrb[0].mxu0 %v1176
      %v1262 = vpop.f32.mrb[0].mxu0
      %v1263 = vadd.f32 0.0, %v1262
      %v1264 = vpop.f32.mrb[0].mxu0
      %1265 = vmatprep.mubr.f32.mxu0 0.0
      %1266 = vmatmul.mubr.f32.gmra.mrb[0].mxu0 %v1179
      %v1267 = vpop.f32.mrb[0].mxu0
      %v1268 = vadd.f32 0.0, %v1267
      %v1269 = vpop.f32.mrb[0].mxu0
      %1270 = vmatprep.mubr.f32.mxu0 0.0
      %1271 = vmatmul.mubr.f32.gmra.mrb[0].mxu0 %v1182
      %v1272 = vpop.f32.mrb[0].mxu0
      %v1273 = vadd.f32 0.0, %v1272
      %v1274 = vpop.f32.mrb[0].mxu0
      %1275 = vmatprep.mubr.f32.mxu0 0.0
      %1276 = vmatmul.mubr.f32.gmra.mrb[0].mxu0 %v1185
      %v1277 = vpop.f32.mrb[0].mxu0
      %v1278 = vadd.f32 0.0, %v1277
      %v1279 = vpop.f32.mrb[0].mxu0
      %1280 = vmatprep.mubr.f32.mxu0 0.0
      %1281 = vmatmul.mubr.f32.gmra.mrb[0].mxu0 %v1188
      %v1282 = vpop.f32.mrb[0].mxu0
      %v1283 = vadd.f32 0.0, %v1282
      %v1284 = vpop.f32.mrb[0].mxu0
      %1285 = vmatprep.mubr.f32.mxu0 0.0
      %1286 = vmatmul.mubr.f32.gmra.mrb[0].mxu0 %v1191
      %v1287 = vpop.f32.mrb[0].mxu0
      %v1288 = vadd.f32 0.0, %v1287
      %v1289 = vpop.f32.mrb[0].mxu0
      %1290 = vmatprep.mubr.f32.mxu0 0.0
      %1291 = vmatmul.mubr.f32.gmra.mrb[0].mxu0 %v1194
      %v1292 = vpop.f32.mrb[0].mxu0
      %v1293 = vadd.f32 0.0, %v1292
      %v1294 = vpop.f32.mrb[0].mxu0
      %1295 = vdwg.mxu0
      %v1296 = vrcp.pop %v1263
      %v1297 = vmul.f32 %v1162, %v1296
      %v1298 = vrcp.pop %v1268
      %v1299 = vmul.f32 %v1164, %v1298
      %v1300 = vrcp.pop %v1273
      %v1301 = vmul.f32 %v1166, %v1300
      %v1302 = vrcp.pop %v1278
      %v1303 = vmul.f32 %v1168, %v1302
      %v1304 = vrcp.pop %v1283
      %v1305 = vmul.f32 %v1170, %v1304
      %v1306 = vrcp.pop %v1288
      %v1307 = vmul.f32 %v1172, %v1306
      %v1308 = vrcp.pop %v1293
      %v1309 = vmul.f32 %v1174, %v1308
      %v1311 = vsel %vm320, 1.0, 0
      %v1314 = vsel %vm345, %v1309, 0
      %1316 = vmatprep.subr.mxu0 0.0
      %1317 = vmatpush1.msra.mxu0 %v1297
      %1318 = vmatprep.subr.mxu0 0.0
      %1319 = vmatpush1.msra.mxu0 %v1299
      %1320 = vmatprep.subr.mxu0 0.0
      %1321 = vmatpush1.msra.mxu0 %v1301
      %1322 = vmatprep.subr.mxu0 0.0
      %1323 = vmatpush1.msra.mxu0 %v1303
      %1324 = vmatprep.subr.mxu0 0.0
      %1325 = vmatpush1.msra.mxu0 %v1305
      %1326 = vmatprep.subr.mxu0 0.0
      %1327 = vmatpush1.msra.mxu0 %v1307
      %1328 = vmatprep.subr.mxu0 0.0
      %1329 = vmatpush1.msra.mxu0 %v1314
      %1330 = vmatprep.subr.mxu0 0.0
      %1331 = vmatpush1.msra.mxu0 0.0
      %1332 = vmatprep.subr.mxu0 0.0
      %1333 = vmatpush1.msra.mxu0 0.0
      %1334 = vmatprep.subr.mxu0 0.0
      %1335 = vmatpush1.msra.mxu0 0.0
      %1336 = vmatprep.subr.mxu0 0.0
      %1337 = vmatpush1.msra.mxu0 0.0
      %1338 = vmatprep.subr.mxu0 0.0
      %1339 = vmatpush1.msra.mxu0 0.0
      %1340 = vmatprep.subr.mxu0 0.0
      %1341 = vmatpush1.msra.mxu0 0.0
      %1342 = vmatprep.subr.mxu0 0.0
      %1343 = vmatpush1.msra.mxu0 0.0
      %1344 = vmatprep.subr.mxu0 0.0
      %1345 = vmatpush1.msra.mxu0 0.0
      %1346 = vmatprep.subr.mxu0 0.0
      %1347 = vmatpush1.msra.mxu0 0.0
      %1348 = vmatprep.subr.mxu0 0.0
      %1349 = vmatpush1.msra.mxu0 0.0
      %1350 = vmatprep.subr.mxu0 0.0
      %1351 = vmatpush1.msra.mxu0 0.0
      %1352 = vmatprep.subr.mxu0 0.0
      %1353 = vmatpush1.msra.mxu0 0.0
      %1354 = vmatprep.subr.mxu0 0.0
      %1355 = vmatpush1.msra.mxu0 0.0
      %1356 = vmatprep.subr.mxu0 0.0
      %1357 = vmatpush1.msra.mxu0 0.0
      %1358 = vmatprep.subr.mxu0 0.0
      %1359 = vmatpush1.msra.mxu0 0.0
      %1360 = vmatprep.subr.mxu0 0.0
      %1361 = vmatpush1.msra.mxu0 0.0
      %1362 = vmatprep.subr.mxu0 0.0
      %1363 = vmatpush1.msra.mxu0 0.0
      %1364 = vmatprep.subr.mxu0 0.0
      %1365 = vmatpush1.msra.mxu0 0.0
      %1366 = vmatprep.subr.mxu0 0.0
      %1367 = vmatpush1.msra.mxu0 0.0
      %1368 = vmatprep.subr.mxu0 0.0
      %1369 = vmatpush1.msra.mxu0 0.0
      %1370 = vmatprep.subr.mxu0 0.0
      %1371 = vmatpush1.msra.mxu0 0.0
      %1372 = vmatprep.subr.mxu0 0.0
      %1373 = vmatpush1.msra.mxu0 0.0
      %1374 = vmatprep.subr.mxu0 0.0
      %1375 = vmatpush1.msra.mxu0 0.0
      %1376 = vmatprep.subr.mxu0 0.0
      %1377 = vmatpush1.msra.mxu0 0.0
      %1378 = vmatprep.subr.mxu0 0.0
      %1379 = vmatpush1.msra.mxu0 0.0
      %1380 = vmatprep.mubr.f32.mxu0 0.0
      %1381 = vmatmul.mubr.f32.gmra.mrb[0].mxu0 %v1311
      %v1382 = vpop.f32.mrb[0].mxu0
      %v1383 = vadd.f32 0.0, %v1382
      %v1384 = vpop.f32.mrb[0].mxu0
      %1385 = vdwg.mxu0
      %v1387 = vsel %vm571, %v1383, 0
      %1389 = vmatprep.subr.mxu0 0.0
      %1390 = vmatpush1.msra.mxu0 %v308
      %1391 = vmatprep.subr.mxu0 0.0
      %1392 = vmatpush1.msra.mxu0 %v309
      %1393 = vmatprep.subr.mxu0 0.0
      %1394 = vmatpush1.msra.mxu0 0.0
      %1395 = vmatprep.subr.mxu0 0.0
      %1396 = vmatpush1.msra.mxu0 0.0
      %1397 = vmatprep.subr.mxu0 0.0
      %1398 = vmatpush1.msra.mxu0 0.0
      %1399 = vmatprep.subr.mxu0 0.0
      %1400 = vmatpush1.msra.mxu0 0.0
      %1401 = vmatprep.subr.mxu0 0.0
      %1402 = vmatpush1.msra.mxu0 0.0
      %1403 = vmatprep.subr.mxu0 0.0
      %1404 = vmatpush1.msra.mxu0 0.0
      %1405 = vmatprep.subr.mxu0 0.0
      %1406 = vmatpush1.msra.mxu0 0.0
      %1407 = vmatprep.subr.mxu0 0.0
      %1408 = vmatpush1.msra.mxu0 0.0
      %1409 = vmatprep.subr.mxu0 0.0
      %1410 = vmatpush1.msra.mxu0 0.0
      %1411 = vmatprep.subr.mxu0 0.0
      %1412 = vmatpush1.msra.mxu0 0.0
      %1413 = vmatprep.subr.mxu0 0.0
      %1414 = vmatpush1.msra.mxu0 0.0
      %1415 = vmatprep.subr.mxu0 0.0
      %1416 = vmatpush1.msra.mxu0 0.0
      %1417 = vmatprep.subr.mxu0 0.0
      %1418 = vmatpush1.msra.mxu0 0.0
      %1419 = vmatprep.subr.mxu0 0.0
      %1420 = vmatpush1.msra.mxu0 0.0
      %1421 = vmatprep.subr.mxu0 0.0
      %1422 = vmatpush1.msra.mxu0 0.0
      %1423 = vmatprep.subr.mxu0 0.0
      %1424 = vmatpush1.msra.mxu0 0.0
      %1425 = vmatprep.subr.mxu0 0.0
      %1426 = vmatpush1.msra.mxu0 0.0
      %1427 = vmatprep.subr.mxu0 0.0
      %1428 = vmatpush1.msra.mxu0 0.0
      %1429 = vmatprep.subr.mxu0 0.0
      %1430 = vmatpush1.msra.mxu0 0.0
      %1431 = vmatprep.subr.mxu0 0.0
      %1432 = vmatpush1.msra.mxu0 0.0
      %1433 = vmatprep.subr.mxu0 0.0
      %1434 = vmatpush1.msra.mxu0 0.0
      %1435 = vmatprep.subr.mxu0 0.0
      %1436 = vmatpush1.msra.mxu0 0.0
      %1437 = vmatprep.subr.mxu0 0.0
      %1438 = vmatpush1.msra.mxu0 0.0
      %1439 = vmatprep.subr.mxu0 0.0
      %1440 = vmatpush1.msra.mxu0 0.0
      %1441 = vmatprep.subr.mxu0 0.0
      %1442 = vmatpush1.msra.mxu0 0.0
      %1443 = vmatprep.subr.mxu0 0.0
      %1444 = vmatpush1.msra.mxu0 0.0
      %1445 = vmatprep.subr.mxu0 0.0
      %1446 = vmatpush1.msra.mxu0 0.0
      %1447 = vmatprep.subr.mxu0 0.0
      %1448 = vmatpush1.msra.mxu0 0.0
      %1449 = vmatprep.subr.mxu0 0.0
      %1450 = vmatpush1.msra.mxu0 0.0
      %1451 = vmatprep.subr.mxu0 0.0
      %1452 = vmatpush1.msra.mxu0 0.0
      %1453 = vmatprep.mubr.f32.mxu0 0.0
      %1454 = vmatmul.mubr.f32.gmra.mrb[0].mxu0 %v1387
      %v1455 = vpop.f32.mrb[0].mxu0
      %v1456 = vadd.f32 0.0, %v1455
      %v1457 = vpop.f32.mrb[0].mxu0
      %1458 = vdwg.mxu0
      %v1459 = vmul.f32 %v1297, %v1297
      %v1460 = vmul.f32 %v1299, %v1299
      %v1461 = vmul.f32 %v1301, %v1301
      %v1462 = vmul.f32 %v1303, %v1303
      %v1463 = vmul.f32 %v1305, %v1305
      %v1464 = vmul.f32 %v1307, %v1307
      %v1465 = vmul.f32 %v1309, %v1309
      %v1467 = vsel %vm345, %v1465, 0
      %1469 = vmatprep.subr.mxu0 0.0
      %1470 = vmatpush1.msra.mxu0 %v1459
      %1471 = vmatprep.subr.mxu0 0.0
      %1472 = vmatpush1.msra.mxu0 %v1460
      %1473 = vmatprep.subr.mxu0 0.0
      %1474 = vmatpush1.msra.mxu0 %v1461
      %1475 = vmatprep.subr.mxu0 0.0
      %1476 = vmatpush1.msra.mxu0 %v1462
      %1477 = vmatprep.subr.mxu0 0.0
      %1478 = vmatpush1.msra.mxu0 %v1463
      %1479 = vmatprep.subr.mxu0 0.0
      %1480 = vmatpush1.msra.mxu0 %v1464
      %1481 = vmatprep.subr.mxu0 0.0
      %1482 = vmatpush1.msra.mxu0 %v1467
      %1483 = vmatprep.subr.mxu0 0.0
      %1484 = vmatpush1.msra.mxu0 0.0
      %1485 = vmatprep.subr.mxu0 0.0
      %1486 = vmatpush1.msra.mxu0 0.0
      %1487 = vmatprep.subr.mxu0 0.0
      %1488 = vmatpush1.msra.mxu0 0.0
      %1489 = vmatprep.subr.mxu0 0.0
      %1490 = vmatpush1.msra.mxu0 0.0
      %1491 = vmatprep.subr.mxu0 0.0
      %1492 = vmatpush1.msra.mxu0 0.0
      %1493 = vmatprep.subr.mxu0 0.0
      %1494 = vmatpush1.msra.mxu0 0.0
      %1495 = vmatprep.subr.mxu0 0.0
      %1496 = vmatpush1.msra.mxu0 0.0
      %1497 = vmatprep.subr.mxu0 0.0
      %1498 = vmatpush1.msra.mxu0 0.0
      %1499 = vmatprep.subr.mxu0 0.0
      %1500 = vmatpush1.msra.mxu0 0.0
      %1501 = vmatprep.subr.mxu0 0.0
      %1502 = vmatpush1.msra.mxu0 0.0
      %1503 = vmatprep.subr.mxu0 0.0
      %1504 = vmatpush1.msra.mxu0 0.0
      %1505 = vmatprep.subr.mxu0 0.0
      %1506 = vmatpush1.msra.mxu0 0.0
      %1507 = vmatprep.subr.mxu0 0.0
      %1508 = vmatpush1.msra.mxu0 0.0
      %1509 = vmatprep.subr.mxu0 0.0
      %1510 = vmatpush1.msra.mxu0 0.0
      %1511 = vmatprep.subr.mxu0 0.0
      %1512 = vmatpush1.msra.mxu0 0.0
      %1513 = vmatprep.subr.mxu0 0.0
      %1514 = vmatpush1.msra.mxu0 0.0
      %1515 = vmatprep.subr.mxu0 0.0
      %1516 = vmatpush1.msra.mxu0 0.0
      %1517 = vmatprep.subr.mxu0 0.0
      %1518 = vmatpush1.msra.mxu0 0.0
      %1519 = vmatprep.subr.mxu0 0.0
      %1520 = vmatpush1.msra.mxu0 0.0
      %1521 = vmatprep.subr.mxu0 0.0
      %1522 = vmatpush1.msra.mxu0 0.0
      %1523 = vmatprep.subr.mxu0 0.0
      %1524 = vmatpush1.msra.mxu0 0.0
      %1525 = vmatprep.subr.mxu0 0.0
      %1526 = vmatpush1.msra.mxu0 0.0
      %1527 = vmatprep.subr.mxu0 0.0
      %1528 = vmatpush1.msra.mxu0 0.0
      %1529 = vmatprep.subr.mxu0 0.0
      %1530 = vmatpush1.msra.mxu0 0.0
      %1531 = vmatprep.subr.mxu0 0.0
      %1532 = vmatpush1.msra.mxu0 0.0
      %1533 = vmatprep.mubr.f32.mxu0 0.0
      %1534 = vmatmul.mubr.f32.gmra.mrb[0].mxu0 %v1311
      %v1535 = vpop.f32.mrb[0].mxu0
      %v1536 = vadd.f32 0.0, %v1535
      %v1537 = vpop.f32.mrb[0].mxu0
      %1538 = vdwg.mxu0
      %v1540 = vsel %vm571, %v1536, 0
      %1542 = vmatprep.subr.mxu0 0.0
      %1543 = vmatpush1.msra.mxu0 %v308
      %1544 = vmatprep.subr.mxu0 0.0
      %1545 = vmatpush1.msra.mxu0 %v309
      %1546 = vmatprep.subr.mxu0 0.0
      %1547 = vmatpush1.msra.mxu0 0.0
      %1548 = vmatprep.subr.mxu0 0.0
      %1549 = vmatpush1.msra.mxu0 0.0
      %1550 = vmatprep.subr.mxu0 0.0
      %1551 = vmatpush1.msra.mxu0 0.0
      %1552 = vmatprep.subr.mxu0 0.0
      %1553 = vmatpush1.msra.mxu0 0.0
      %1554 = vmatprep.subr.mxu0 0.0
      %1555 = vmatpush1.msra.mxu0 0.0
      %1556 = vmatprep.subr.mxu0 0.0
      %1557 = vmatpush1.msra.mxu0 0.0
      %1558 = vmatprep.subr.mxu0 0.0
      %1559 = vmatpush1.msra.mxu0 0.0
      %1560 = vmatprep.subr.mxu0 0.0
      %1561 = vmatpush1.msra.mxu0 0.0
      %1562 = vmatprep.subr.mxu0 0.0
      %1563 = vmatpush1.msra.mxu0 0.0
      %1564 = vmatprep.subr.mxu0 0.0
      %1565 = vmatpush1.msra.mxu0 0.0
      %1566 = vmatprep.subr.mxu0 0.0
      %1567 = vmatpush1.msra.mxu0 0.0
      %1568 = vmatprep.subr.mxu0 0.0
      %1569 = vmatpush1.msra.mxu0 0.0
      %1570 = vmatprep.subr.mxu0 0.0
      %1571 = vmatpush1.msra.mxu0 0.0
      %1572 = vmatprep.subr.mxu0 0.0
      %1573 = vmatpush1.msra.mxu0 0.0
      %1574 = vmatprep.subr.mxu0 0.0
      %1575 = vmatpush1.msra.mxu0 0.0
      %1576 = vmatprep.subr.mxu0 0.0
      %1577 = vmatpush1.msra.mxu0 0.0
      %1578 = vmatprep.subr.mxu0 0.0
      %1579 = vmatpush1.msra.mxu0 0.0
      %1580 = vmatprep.subr.mxu0 0.0
      %1581 = vmatpush1.msra.mxu0 0.0
      %1582 = vmatprep.subr.mxu0 0.0
      %1583 = vmatpush1.msra.mxu0 0.0
      %1584 = vmatprep.subr.mxu0 0.0
      %1585 = vmatpush1.msra.mxu0 0.0
      %1586 = vmatprep.subr.mxu0 0.0
      %1587 = vmatpush1.msra.mxu0 0.0
      %1588 = vmatprep.subr.mxu0 0.0
      %1589 = vmatpush1.msra.mxu0 0.0
      %1590 = vmatprep.subr.mxu0 0.0
      %1591 = vmatpush1.msra.mxu0 0.0
      %1592 = vmatprep.subr.mxu0 0.0
      %1593 = vmatpush1.msra.mxu0 0.0
      %1594 = vmatprep.subr.mxu0 0.0
      %1595 = vmatpush1.msra.mxu0 0.0
      %1596 = vmatprep.subr.mxu0 0.0
      %1597 = vmatpush1.msra.mxu0 0.0
      %1598 = vmatprep.subr.mxu0 0.0
      %1599 = vmatpush1.msra.mxu0 0.0
      %1600 = vmatprep.subr.mxu0 0.0
      %1601 = vmatpush1.msra.mxu0 0.0
      %1602 = vmatprep.subr.mxu0 0.0
      %1603 = vmatpush1.msra.mxu0 0.0
      %1604 = vmatprep.subr.mxu0 0.0
      %1605 = vmatpush1.msra.mxu0 0.0
      %1606 = vmatprep.mubr.f32.mxu0 0.0
      %1607 = vmatmul.mubr.f32.gmra.mrb[0].mxu0 %v1540
      %v1608 = vpop.f32.mrb[0].mxu0
      %v1609 = vadd.f32 0.0, %v1608
      %v1610 = vpop.f32.mrb[0].mxu0
      %1611 = vdwg.mxu0
      %v1612 = vmul.f32 %v1456, 0.0051020407
      %v1613 = vmul.f32 %v1609, 0.0051020407
      %v1614 = vmul.f32 %v1612, %v1612
      %v1615 = vsub.f32 %v1613, %v1614
      %v1616 = vlaneseq
      %v1617 = vshrl.u32 %v1616, 7
      %v1618 = vsub.s32 0, %v1617
      %v1619 = vrot.slane %v1612, %v1618
      %v1620 = vsub.f32 %v1297, %v1619
      %v1621 = vsub.f32 %v1299, %v1619
      %v1622 = vsub.f32 %v1301, %v1619
      %v1623 = vsub.f32 %v1303, %v1619
      %v1624 = vsub.f32 %v1305, %v1619
      %v1625 = vsub.f32 %v1307, %v1619
      %v1626 = vsub.f32 %v1309, %v1619
      %v1627 = vadd.f32 %v1615, 1e-05
      %v1628 = vrsqrt.pop %v1627
      %v1629 = vlaneseq
      %v1630 = vshrl.u32 %v1629, 7
      %v1631 = vsub.s32 0, %v1630
      %v1632 = vrot.slane %v1628, %v1631
      %v1633 = vmul.f32 %v1620, %v1632
      %v1634 = vmul.f32 %v1621, %v1632
      %v1635 = vmul.f32 %v1622, %v1632
      %v1636 = vmul.f32 %v1623, %v1632
      %v1637 = vmul.f32 %v1624, %v1632
      %v1638 = vmul.f32 %v1625, %v1632
      %v1639 = vmul.f32 %v1626, %v1632
      %1640 = vrot.lane.b32.xlu0 %v877, 96
      %v1641 = vpop.permute.xlu0 %1640
      %1642 = vrot.lane.b32.xlu0 %v878, 96
      %v1643 = vpop.permute.xlu0 %1642
      %v1647 = vsel %vm571, %v1633, 0
      %v1650 = vsel %vm571, %v1634, 0
      %v1653 = vsel %vm571, %v1635, 0
      %v1656 = vsel %vm571, %v1636, 0
      %v1659 = vsel %vm571, %v1637, 0
      %v1662 = vsel %vm571, %v1638, 0
      %v1665 = vsel %vm571, %v1639, 0
      %1667 = vmatprep.subr.mxu0 0.0
      %1668 = vmatpush1.msra.mxu0 %v1641
      %1669 = vmatprep.subr.mxu0 0.0
      %1670 = vmatpush1.msra.mxu0 %v1643
      %1671 = vmatprep.subr.mxu0 0.0
      %1672 = vmatpush1.msra.mxu0 0.0
      %1673 = vmatprep.subr.mxu0 0.0
      %1674 = vmatpush1.msra.mxu0 0.0
      %1675 = vmatprep.subr.mxu0 0.0
      %1676 = vmatpush1.msra.mxu0 0.0
      %1677 = vmatprep.subr.mxu0 0.0
      %1678 = vmatpush1.msra.mxu0 0.0
      %1679 = vmatprep.subr.mxu0 0.0
      %1680 = vmatpush1.msra.mxu0 0.0
      %1681 = vmatprep.subr.mxu0 0.0
      %1682 = vmatpush1.msra.mxu0 0.0
      %1683 = vmatprep.subr.mxu0 0.0
      %1684 = vmatpush1.msra.mxu0 0.0
      %1685 = vmatprep.subr.mxu0 0.0
      %1686 = vmatpush1.msra.mxu0 0.0
      %1687 = vmatprep.subr.mxu0 0.0
      %1688 = vmatpush1.msra.mxu0 0.0
      %1689 = vmatprep.subr.mxu0 0.0
      %1690 = vmatpush1.msra.mxu0 0.0
      %1691 = vmatprep.subr.mxu0 0.0
      %1692 = vmatpush1.msra.mxu0 0.0
      %1693 = vmatprep.subr.mxu0 0.0
      %1694 = vmatpush1.msra.mxu0 0.0
      %1695 = vmatprep.subr.mxu0 0.0
      %1696 = vmatpush1.msra.mxu0 0.0
      %1697 = vmatprep.subr.mxu0 0.0
      %1698 = vmatpush1.msra.mxu0 0.0
      %1699 = vmatprep.subr.mxu0 0.0
      %1700 = vmatpush1.msra.mxu0 0.0
      %1701 = vmatprep.subr.mxu0 0.0
      %1702 = vmatpush1.msra.mxu0 0.0
      %1703 = vmatprep.subr.mxu0 0.0
      %1704 = vmatpush1.msra.mxu0 0.0
      %1705 = vmatprep.subr.mxu0 0.0
      %1706 = vmatpush1.msra.mxu0 0.0
      %1707 = vmatprep.subr.mxu0 0.0
      %1708 = vmatpush1.msra.mxu0 0.0
      %1709 = vmatprep.subr.mxu0 0.0
      %1710 = vmatpush1.msra.mxu0 0.0
      %1711 = vmatprep.subr.mxu0 0.0
      %1712 = vmatpush1.msra.mxu0 0.0
      %1713 = vmatprep.subr.mxu0 0.0
      %1714 = vmatpush1.msra.mxu0 0.0
      %1715 = vmatprep.subr.mxu0 0.0
      %1716 = vmatpush1.msra.mxu0 0.0
      %1717 = vmatprep.subr.mxu0 0.0
      %1718 = vmatpush1.msra.mxu0 0.0
      %1719 = vmatprep.subr.mxu0 0.0
      %1720 = vmatpush1.msra.mxu0 0.0
      %1721 = vmatprep.subr.mxu0 0.0
      %1722 = vmatpush1.msra.mxu0 0.0
      %1723 = vmatprep.subr.mxu0 0.0
      %1724 = vmatpush1.msra.mxu0 0.0
      %1725 = vmatprep.subr.mxu0 0.0
      %1726 = vmatpush1.msra.mxu0 0.0
      %1727 = vmatprep.subr.mxu0 0.0
      %1728 = vmatpush1.msra.mxu0 0.0
      %1729 = vmatprep.subr.mxu0 0.0
      %1730 = vmatpush1.msra.mxu0 0.0
      %1731 = vmatprep.mubr.f32.mxu0 0.0
      %1732 = vmatmul.mubr.f32.gmra.mrb[0].mxu0 %v1647
      %v1733 = vpop.f32.mrb[0].mxu0
      %v1734 = vadd.f32 0.0, %v1733
      %v1735 = vpop.f32.mrb[0].mxu0
      %1736 = vmatprep.mubr.f32.mxu0 0.0
      %1737 = vmatmul.mubr.f32.gmra.mrb[0].mxu0 %v1650
      %v1738 = vpop.f32.mrb[0].mxu0
      %v1739 = vadd.f32 0.0, %v1738
      %v1740 = vpop.f32.mrb[0].mxu0
      %1741 = vmatprep.mubr.f32.mxu0 0.0
      %1742 = vmatmul.mubr.f32.gmra.mrb[0].mxu0 %v1653
      %v1743 = vpop.f32.mrb[0].mxu0
      %v1744 = vadd.f32 0.0, %v1743
      %v1745 = vpop.f32.mrb[0].mxu0
      %1746 = vmatprep.mubr.f32.mxu0 0.0
      %1747 = vmatmul.mubr.f32.gmra.mrb[0].mxu0 %v1656
      %v1748 = vpop.f32.mrb[0].mxu0
      %v1749 = vadd.f32 0.0, %v1748
      %v1750 = vpop.f32.mrb[0].mxu0
      %1751 = vmatprep.mubr.f32.mxu0 0.0
      %1752 = vmatmul.mubr.f32.gmra.mrb[0].mxu0 %v1659
      %v1753 = vpop.f32.mrb[0].mxu0
      %v1754 = vadd.f32 0.0, %v1753
      %v1755 = vpop.f32.mrb[0].mxu0
      %1756 = vmatprep.mubr.f32.mxu0 0.0
      %1757 = vmatmul.mubr.f32.gmra.mrb[0].mxu0 %v1662
      %v1758 = vpop.f32.mrb[0].mxu0
      %v1759 = vadd.f32 0.0, %v1758
      %v1760 = vpop.f32.mrb[0].mxu0
      %1761 = vmatprep.mubr.f32.mxu0 0.0
      %1762 = vmatmul.mubr.f32.gmra.mrb[0].mxu0 %v1665
      %v1763 = vpop.f32.mrb[0].mxu0
      %v1764 = vadd.f32 0.0, %v1763
      %v1765 = vpop.f32.mrb[0].mxu0
      %1766 = vdwg.mxu0
      %v1767 = vlaneseq
      %v1768 = vshrl.u32 %v1767, 7
      %v1769 = vsub.s32 0, %v1768
      %v1770 = vrot.slane %v300, %v1769
      %v1772 = vsel %vm879, %v1734, 0
      %v1775 = vsel %vm879, %v1739, 0
      %v1778 = vsel %vm879, %v1744, 0
      %v1781 = vsel %vm879, %v1749, 0
      %v1784 = vsel %vm879, %v1754, 0
      %v1787 = vsel %vm879, %v1759, 0
      %v1790 = vsel %vm879, %v1764, 0
      %1792 = vmatprep.subr.mxu0 0.0
      %1793 = vmatpush1.msra.mxu0 %v301
      %1794 = vmatprep.subr.mxu0 0.0
      %1795 = vmatpush1.msra.mxu0 %v302
      %1796 = vmatprep.subr.mxu0 0.0
      %1797 = vmatpush1.msra.mxu0 %v303
      %1798 = vmatprep.subr.mxu0 0.0
      %1799 = vmatpush1.msra.mxu0 %v304
      %1800 = vmatprep.subr.mxu0 0.0
      %1801 = vmatpush1.msra.mxu0 0.0
      %1802 = vmatprep.subr.mxu0 0.0
      %1803 = vmatpush1.msra.mxu0 0.0
      %1804 = vmatprep.subr.mxu0 0.0
      %1805 = vmatpush1.msra.mxu0 0.0
      %1806 = vmatprep.subr.mxu0 0.0
      %1807 = vmatpush1.msra.mxu0 0.0
      %1808 = vmatprep.subr.mxu0 0.0
      %1809 = vmatpush1.msra.mxu0 0.0
      %1810 = vmatprep.subr.mxu0 0.0
      %1811 = vmatpush1.msra.mxu0 0.0
      %1812 = vmatprep.subr.mxu0 0.0
      %1813 = vmatpush1.msra.mxu0 0.0
      %1814 = vmatprep.subr.mxu0 0.0
      %1815 = vmatpush1.msra.mxu0 0.0
      %1816 = vmatprep.subr.mxu0 0.0
      %1817 = vmatpush1.msra.mxu0 0.0
      %1818 = vmatprep.subr.mxu0 0.0
      %1819 = vmatpush1.msra.mxu0 0.0
      %1820 = vmatprep.subr.mxu0 0.0
      %1821 = vmatpush1.msra.mxu0 0.0
      %1822 = vmatprep.subr.mxu0 0.0
      %1823 = vmatpush1.msra.mxu0 0.0
      %1824 = vmatprep.subr.mxu0 0.0
      %1825 = vmatpush1.msra.mxu0 0.0
      %1826 = vmatprep.subr.mxu0 0.0
      %1827 = vmatpush1.msra.mxu0 0.0
      %1828 = vmatprep.subr.mxu0 0.0
      %1829 = vmatpush1.msra.mxu0 0.0
      %1830 = vmatprep.subr.mxu0 0.0
      %1831 = vmatpush1.msra.mxu0 0.0
      %1832 = vmatprep.subr.mxu0 0.0
      %1833 = vmatpush1.msra.mxu0 0.0
      %1834 = vmatprep.subr.mxu0 0.0
      %1835 = vmatpush1.msra.mxu0 0.0
      %1836 = vmatprep.subr.mxu0 0.0
      %1837 = vmatpush1.msra.mxu0 0.0
      %1838 = vmatprep.subr.mxu0 0.0
      %1839 = vmatpush1.msra.mxu0 0.0
      %1840 = vmatprep.subr.mxu0 0.0
      %1841 = vmatpush1.msra.mxu0 0.0
      %1842 = vmatprep.subr.mxu0 0.0
      %1843 = vmatpush1.msra.mxu0 0.0
      %1844 = vmatprep.subr.mxu0 0.0
      %1845 = vmatpush1.msra.mxu0 0.0
      %1846 = vmatprep.subr.mxu0 0.0
      %1847 = vmatpush1.msra.mxu0 0.0
      %1848 = vmatprep.subr.mxu0 0.0
      %1849 = vmatpush1.msra.mxu0 0.0
      %1850 = vmatprep.subr.mxu0 0.0
      %1851 = vmatpush1.msra.mxu0 0.0
      %1852 = vmatprep.subr.mxu0 0.0
      %1853 = vmatpush1.msra.mxu0 0.0
      %1854 = vmatprep.subr.mxu0 0.0
      %1855 = vmatpush1.msra.mxu0 0.0
      %1856 = vmatprep.mubr.f32.mxu0 0.0
      %1857 = vmatmul.mubr.f32.gmra.mrb[0].mxu0 %v1772
      %v1858 = vpop.f32.mrb[0].mxu0
      %v1859 = vadd.f32 %v1770, %v1858
      %v1860 = vpop.f32.mrb[0].mxu0
      %1861 = vmatprep.mubr.f32.mxu0 0.0
      %1862 = vmatmul.mubr.f32.gmra.mrb[0].mxu0 %v1775
      %v1863 = vpop.f32.mrb[0].mxu0
      %v1864 = vadd.f32 %v1770, %v1863
      %v1865 = vpop.f32.mrb[0].mxu0
      %1866 = vmatprep.mubr.f32.mxu0 0.0
      %1867 = vmatmul.mubr.f32.gmra.mrb[0].mxu0 %v1778
      %v1868 = vpop.f32.mrb[0].mxu0
      %v1869 = vadd.f32 %v1770, %v1868
      %v1870 = vpop.f32.mrb[0].mxu0
      %1871 = vmatprep.mubr.f32.mxu0 0.0
      %1872 = vmatmul.mubr.f32.gmra.mrb[0].mxu0 %v1781
      %v1873 = vpop.f32.mrb[0].mxu0
      %v1874 = vadd.f32 %v1770, %v1873
      %v1875 = vpop.f32.mrb[0].mxu0
      %1876 = vmatprep.mubr.f32.mxu0 0.0
      %1877 = vmatmul.mubr.f32.gmra.mrb[0].mxu0 %v1784
      %v1878 = vpop.f32.mrb[0].mxu0
      %v1879 = vadd.f32 %v1770, %v1878
      %v1880 = vpop.f32.mrb[0].mxu0
      %1881 = vmatprep.mubr.f32.mxu0 0.0
      %1882 = vmatmul.mubr.f32.gmra.mrb[0].mxu0 %v1787
      %v1883 = vpop.f32.mrb[0].mxu0
      %v1884 = vadd.f32 %v1770, %v1883
      %v1885 = vpop.f32.mrb[0].mxu0
      %1886 = vmatprep.mubr.f32.mxu0 0.0
      %1887 = vmatmul.mubr.f32.gmra.mrb[0].mxu0 %v1790
      %v1888 = vpop.f32.mrb[0].mxu0
      %v1889 = vadd.f32 %v1770, %v1888
      %v1890 = vpop.f32.mrb[0].mxu0
      %1891 = vdwg.mxu0
      %1892 = vst.msk [vmem:[%s278] sm:$0xff] %vm571, %v1859
      %1893 = vst.msk [vmem:[%s278 + $0x8] sm:$0xff] %vm571, %v1864
      %1894 = vst.msk [vmem:[%s278 + $0x10] sm:$0xff] %vm571, %v1869
      %1895 = vst.msk [vmem:[%s278 + $0x18] sm:$0xff] %vm571, %v1874
      %1896 = vst.msk [vmem:[%s278 + $0x20] sm:$0xff] %vm571, %v1879
      %1897 = vst.msk [vmem:[%s278 + $0x28] sm:$0xff] %vm571, %v1884
      %1898 = vst.msk [vmem:[%s278 + $0x30] sm:$0x1] %vm1150, %v1889
      %p1899 = scmp.lt.s32.totalorder %s18, 1
      %s1900 = scalar_select %p1899, %s18, 1
      %s1901 = smul.addr %s1900, 7
      %s1902 = smul.addr %s1901, 8
      %s1903 = scalar_lea.vmem %s7, %s1902
      // Predicated region
      $region49: #{tpu_custom_call.1} parent=47 // pred_check
        %p1904 = pneg %p188
      $region50: #{tpu_custom_call.1} parent=47 // pred_check_branch
        %1906 = sbr.rel (%p1904) target = $region52
      $region51: #{tpu_custom_call.1} parent=47 // pred_region
        _
      $region52: #{tpu_custom_call.1} parent=47 // pred_fallthru
        _
    $region48: #{tpu_custom_call.1} parent=5 // pred_fallthru
      _
    %p1907 = scmp.le.s32.totalorder 2, %s13
    // Predicated region
    $region53: #{tpu_custom_call.1} parent=5 // pred_check
      %p1908 = pneg %p1907
    $region54: #{tpu_custom_call.1} parent=5 // pred_check_branch
      %1910 = sbr.rel (%p1908) target = $region56
    $region55: #{tpu_custom_call.1} parent=5 // pred_region
      %s1911 = ssub.s32 %s13, 2
      // Predicated region
      $region57: #{tpu_custom_call.1} parent=55 // pred_check
        %p1912 = pneg %p194
      $region58: #{tpu_custom_call.1} parent=55 // pred_check_branch
        %1914 = sbr.rel (%p1912) target = $region60
      $region59: #{tpu_custom_call.1} parent=55 // pred_region
        %p1915 = scmp.lt.s32.totalorder %s19, 1
        %s1916 = scalar_select %p1915, %s19, 1
        %s1917 = smul.addr %s1916, 7
        %s1918 = smul.addr %s1917, 8
        %s1919 = scalar_lea.vmem %s7, %s1918
      $region60: #{tpu_custom_call.1} parent=55 // pred_fallthru
        _
    $region56: #{tpu_custom_call.1} parent=5 // pred_fallthru
      _
  $region6: #{tpu_custom_call.1} parent=0 // loop_footer
    %s17 = sadd.s32 1, %s13
  $region7: #{tpu_custom_call.1} parent=0 // loop_footer_branch
    %12 = sbr.rel target = $region3
  $region8: #{tpu_custom_call.1} parent=0 // loop_exit
    _

</llo_original>
